<compile_context>
chip_gen: v5e
topology: v5e:2x2
jax: 0.10.0
libtpu: 0.0.40
codegen_flags: <defaults>
</compile_context>

<pallas_src>
import functools

import numpy as np
import jax
import jax.numpy as jnp
from jax import lax
from jax.experimental import pallas as pl
from jax.experimental.pallas import tpu as pltpu


# ---------------------------------------------------------------------------
# Host-side constants (w-independent), cached per (H, W) as device arrays
# ---------------------------------------------------------------------------
def _poisson_divergence_operators_np(H, W):
    """float64-built (HW, HW) float32 matrices Kx, Ky with
         grad_out_flat = gx_flat @ Kx + gy_flat @ Ky
       == irfft2(rfft2(div_circ(gx, gy)) * inv_laplacian)  (DC passed through)."""
    assert H >= 2 and W >= 2
    HW = H * W
    u = np.arange(H)
    v = np.arange(W)
    lap = (4.0 - 2.0 * np.cos(2.0 * np.pi * u / H)[:, None]
               - 2.0 * np.cos(2.0 * np.pi * v / W)[None, :])
    lap[np.abs(lap) < 1e-32] = 1.0              # DC -> passthrough, as in the torch ref
    inv = 1.0 / lap                              # real, even-symmetric full spectrum
    g = np.real(np.fft.ifft2(inv))               # circular Poisson kernel, (H, W)

    idx = np.arange(HW)
    p, q = idx // W, idx % W
    # Circular-convolution matrix: K[m=(p,q), n=(i,j)] = g[(i-p)%H, (j-q)%W]
    K = g[(p[None, :] - p[:, None]) % H, (q[None, :] - q[:, None]) % W]

    # Circular divergence (d_flat = gx_flat @ Dx + gy_flat @ Dy):
    #   d[p,q] = gx[p,q] - gx[p,(q+1)%W] + gy[p,q] - gy[(p+1)%H,q]
    Dx = np.zeros((HW, HW), np.float64)
    Dy = np.zeros((HW, HW), np.float64)
    Dx[idx, idx] += 1.0
    Dx[p * W + (q + 1) % W, idx] += -1.0
    Dy[idx, idx] += 1.0
    Dy[((p + 1) % H) * W + q, idx] += -1.0

    return (Dx @ K).astype(np.float32), (Dy @ K).astype(np.float32)


def _shift_operators_np(H, W):
    """S[t] (HW, HW): zero-padded 3x3 tap shift.  S[t, p, q] = 1 iff the input pixel
       p == q + (dh, dw) is in-bounds; tap order t = (dh+1)*3 + (dw+1) (matches the
       row-major flatten of a (3, 3) conv kernel)."""
    HW = H * W
    q = np.arange(HW)
    rq, cq = q // W, q % W
    S = np.zeros((9, HW, HW), np.float32)
    t = 0
    for dh in (-1, 0, 1):
        for dw in (-1, 0, 1):
            rr, cc = rq + dh, cq + dw
            valid = (rr >= 0) & (rr < H) & (cc >= 0) & (cc < W)
            p = rr * W + cc
            S[t, p[valid], q[valid]] = 1.0
            t += 1
    return S


@functools.lru_cache(maxsize=None)
def _fixed_operators(H, W):
    """Device-resident cached constants: Kx, Ky (HW, HW) and S (9, HW, HW)."""
    Kx, Ky = _poisson_divergence_operators_np(H, W)
    S = _shift_operators_np(H, W)
    return jnp.asarray(Kx), jnp.asarray(Ky), jnp.asarray(S)


# ---------------------------------------------------------------------------
# Fold Poisson solve + offset + 3x3 zero-pad conv + bias into one dense operator
# (pure jnp -> differentiable w.r.t. w and b)
# ---------------------------------------------------------------------------
def _fold_operator(Kx, Ky, S, w, b, offset):
    """Returns big_op (9*HW, 3*HW) and bias_row (1, 3*HW) such that
         mix_flat = x_flat @ big_op + bias_row,  with x_flat = x.reshape(B, 9*HW)."""
    HW = Kx.shape[0]
    hi = lax.Precision.HIGHEST
    w_t = w.reshape(3, 6, 9).astype(jnp.float32)             # (cout, cin, tap)
    # Per (cout, cin) conv-as-matrix: M[o, cin, p, q] = sum_t w[o,cin,t] * S[t,p,q]
    M = jnp.einsum('oct,tpq->ocpq', w_t, S, precision=hi)    # (3, 6, HW, HW)
    Mg, Mr = M[:, :3], M[:, 3:]                               # grad-out / rgb channels
    # Compose the Poisson solve with the conv taps of the grad-out channels.
    Ax = jnp.einsum('pm,ormq->orpq', Kx, Mg, precision=hi)    # (3, 3, HW, HW)
    Ay = jnp.einsum('pm,ormq->orpq', Ky, Mg, precision=hi)
    # Input-channel-major row blocks: [gx0..2, gy0..2, rgb0..2] x HW pixels.
    blocks = jnp.concatenate(
        [jnp.transpose(Ax, (1, 2, 0, 3)),                     # (r, p, o, q)
         jnp.transpose(Ay, (1, 2, 0, 3)),
         jnp.transpose(Mr, (1, 2, 0, 3))], axis=0)            # (9, HW, 3, HW)
    big_op = blocks.reshape(9 * HW, 3 * HW)
    # The scalar offset feeds the 3 grad-out conv input channels; b adds per cout.
    bias_map = (jnp.float32(offset) * jnp.einsum('orpq->oq', Mg)
                + b.reshape(3, 1).astype(jnp.float32))        # (3, HW)
    return big_op, bias_map.reshape(1, 3 * HW)


# ---------------------------------------------------------------------------
# The Pallas kernel: one lane-dense matmul + bias over the whole batch
# ---------------------------------------------------------------------------
def _mixed2rgb_kernel(x_ref, op_ref, bias_ref, out_ref):
    # x_ref: (B, 9*HW)  op_ref: (9*HW, TN)  bias_ref: (1, TN)  out_ref: (B, TN)
    acc = jnp.dot(x_ref[...].astype(jnp.float32), op_ref[...],
                  preferred_element_type=jnp.float32)
    out_ref[...] = (acc + bias_ref[...]).astype(out_ref.dtype)


# ---------------------------------------------------------------------------
# Wrapper (mode == "mix")
# ---------------------------------------------------------------------------
def mixed2rgb_forward(x, w, b, img_size, offset=0.0):
    """Returns (mix_layer(cat(Gradient2Tensor(grad) + offset, rgb)), grad)."""
    B, C, H, W = x.shape
    assert (H, W) == tuple(img_size) and C == 9
    HW = H * W

    Kx, Ky, S = _fixed_operators(H, W)
    big_op, bias_row = _fold_operator(Kx, Ky, S, w, b, offset)

    x_flat = x.reshape(B, C * HW)                 # contiguous: free

    # Tile the 3*HW output lanes into 2 parallel steps (one per v7x TensorCore);
    # each step is a lane-dense (B, 9*HW) @ (9*HW, TN) matmul.  On 1-TC chips the
    # extra step costs ~0.35 us.  Falls back to one step if TN wouldn't be a
    # multiple of 128.
    n_blk = 2 if (3 * HW) % (2 * 128) == 0 else 1
    TN = (3 * HW) // n_blk

    mix_flat = pl.pallas_call(
        _mixed2rgb_kernel,
        out_shape=jax.ShapeDtypeStruct((B, 3 * HW), x.dtype),
        grid=(n_blk,),
        in_specs=[
            pl.BlockSpec((B, C * HW), lambda j: (0, 0)),    # whole batch, DMA'd once
            pl.BlockSpec((9 * HW, TN), lambda j: (0, j)),   # folded-operator N-tile
            pl.BlockSpec((1, TN), lambda j: (0, j)),        # folded offset + bias map
        ],
        out_specs=pl.BlockSpec((B, TN), lambda j: (0, j)),
        compiler_params=pltpu.CompilerParams(
            dimension_semantics=("parallel",)),
    )(x_flat, big_op, bias_row)

    mix = mix_flat.reshape(B, 3, H, W)
    grad = x[:, :6]
    return mix, grad


# ---------------------------------------------------------------------------
# Pure-JAX reference (sanity check only)
# ---------------------------------------------------------------------------
def ref_forward(x, w, b, H, W, offset=0.0):
    grad = x[:, :6]
    rgb = x[:, 6:9]
    gx = grad[:, :3]
    gy = grad[:, 3:6]
    d = gx - jnp.roll(gx, -1, axis=3) + gy - jnp.roll(gy, -1, axis=2)
    u = np.arange(H)
    v = np.arange(W // 2 + 1)
    lap = (4.0 - 2.0 * np.cos(2.0 * np.pi * u / H)[:, None]
               - 2.0 * np.cos(2.0 * np.pi * v / W)[None, :])
    lap[np.abs(lap) < 1e-32] = 1.0
    inv = (1.0 / lap).astype(np.float32)
    D = jnp.fft.rfft2(d)
    grad_out = jnp.fft.irfft2(D * inv, s=(H, W)).astype(x.dtype) + offset
    cat = jnp.concatenate([grad_out, rgb], axis=1)
    mix = lax.conv_general_dilated(
        cat, w, (1, 1), ((1, 1), (1, 1)),
        dimension_numbers=("NCHW", "OIHW", "NCHW"),
        precision=lax.Precision.HIGHEST) + b.reshape(1, 3, 1, 1)
    return mix, grad


if __name__ == "__main__":
    B, H, W = 2, 16, 16
    key = jax.random.PRNGKey(0)
    kx_key, kw_key, kb_key = jax.random.split(key, 3)

    x = jax.random.normal(kx_key, (B, 9, H, W), dtype=jnp.float32)
    fan_in = 6 * 3 * 3
    bound = 1.0 / np.sqrt(fan_in)
    w = jax.random.uniform(kw_key, (3, 6, 3, 3), jnp.float32, -bound, bound)
    b = jax.random.uniform(kb_key, (3,), jnp.float32, -bound, bound)

    mix_out, grad_pass = mixed2rgb_forward(x, w, b, img_size=(H, W))
    jax.block_until_ready((mix_out, grad_pass))

    mix_ref, grad_ref = ref_forward(x, w, b, H, W)
    np.testing.assert_allclose(np.asarray(mix_out), np.asarray(mix_ref),
                               rtol=5e-2, atol=5e-2)
    np.testing.assert_allclose(np.asarray(grad_pass), np.asarray(grad_ref))
    assert mix_out.shape == (B, 3, H, W) and grad_pass.shape == (B, 6, H, W)
    print("KERNEL_OK")
</pallas_src>

<mosaic_0001>
module attributes {stable_mosaic.version = 11 : i64} {
  func.func @_mixed2rgb_kernel(%arg0: i32, %arg1: memref<2x2304xf32, #tpu.memory_space<vmem>>, %arg2: memref<2304x384xf32, #tpu.memory_space<vmem>>, %arg3: memref<1x384xf32, #tpu.memory_space<vmem>>, %arg4: memref<2x384xf32, #tpu.memory_space<vmem>>) attributes {dimension_semantics = [#tpu.dimension_semantics<parallel>], iteration_bounds = array<i64: 2>, scalar_prefetch = 0 : i64, scratch_operands = 0 : i64, tpu.core_type = #tpu.core_type<tc>, window_params = [{pipeline_mode = #tpu.pipeline_mode<synchronous>, transform_indices = @transform_0, window_bounds = array<i64: 2, 2304>}, {transform_indices = @transform_1, window_bounds = array<i64: 2304, 384>}, {transform_indices = @transform_2, window_bounds = array<i64: 1, 384>}, {transform_indices = @transform_3, window_bounds = array<i64: 2, 384>}]} {
    %c0 = arith.constant 0 : index
    %c0_0 = arith.constant 0 : index
    %0 = vector.load %arg1[%c0, %c0_0] : memref<2x2304xf32, #tpu.memory_space<vmem>>, vector<2x2304xf32>
    %c0_1 = arith.constant 0 : index
    %c0_2 = arith.constant 0 : index
    %1 = vector.load %arg2[%c0_1, %c0_2] : memref<2304x384xf32, #tpu.memory_space<vmem>>, vector<2304x384xf32>
    %cst = arith.constant dense<0.000000e+00> : vector<2x384xf32>
    %2 = tpu.matmul %0, %1, %cst {dimension_numbers = #tpu.dot_dimension_numbers<[1], [0], [0], [1], [0, 0, 1, 1], [], []>} : vector<2x2304xf32>, vector<2304x384xf32>, vector<2x384xf32> -> vector<2x384xf32>
    %c0_3 = arith.constant 0 : index
    %c0_4 = arith.constant 0 : index
    %3 = vector.load %arg3[%c0_3, %c0_4] : memref<1x384xf32, #tpu.memory_space<vmem>>, vector<1x384xf32>
    %4 = vector.broadcast %3 : vector<1x384xf32> to vector<2x384xf32>
    %5 = arith.addf %2, %4 : vector<2x384xf32>
    %c0_5 = arith.constant 0 : index
    %c0_6 = arith.constant 0 : index
    %6 = vector.load %arg4[%c0_5, %c0_6] : memref<2x384xf32, #tpu.memory_space<vmem>>, vector<2x384xf32>
    tpu.vector_store %arg4[%c0_5, %c0_6], %5 {strides = array<i32>} : memref<2x384xf32, #tpu.memory_space<vmem>>, vector<2x384xf32>,
    return
  }
  func.func @transform_0(%arg0: i32) -> (i32, i32) {
    %c0_i32 = arith.constant 0 : i32
    %c0_i32_0 = arith.constant 0 : i32
    %c0_i32_1 = arith.constant 0 : i32
    return %c0_i32, %c0_i32_0 : i32, i32
  }
  func.func @transform_1(%arg0: i32) -> (i32, i32) {
    %c0_i32 = arith.constant 0 : i32
    %c0_i32_0 = arith.constant 0 : i32
    return %c0_i32, %arg0 : i32, i32
  }
  func.func @transform_2(%arg0: i32) -> (i32, i32) {
    %c0_i32 = arith.constant 0 : i32
    %c0_i32_0 = arith.constant 0 : i32
    return %c0_i32, %arg0 : i32, i32
  }
  func.func @transform_3(%arg0: i32) -> (i32, i32) {
    %c0_i32 = arith.constant 0 : i32
    %c0_i32_0 = arith.constant 0 : i32
    return %c0_i32, %arg0 : i32, i32
  }
}

</mosaic_0001>

<llo_original>
// kernel: tpu_custom_call.1
$region0: #{tpu_custom_call.1}
  #allocation0 [shape = 'u32[]', space=smem, size = 0x4, offset = 0x4, fixed_abs, tag = 'smem constant byte address 0x4 - core index']
  #allocation1 [shape = 'u32[72,128]{1,0:T(1,128)}', space=vmem, size = 0x9000, scoped, tag = 'internal scratch']
  %s0 = inlined_call_operand.hbm [shape: f32[2,2304], index: 0, kind: input, shape index: {}]
  %s1 = inlined_call_operand.hbm [shape: f32[2304,768], index: 1, kind: input, shape index: {}]
  %s2 = inlined_call_operand.hbm [shape: f32[1,768], index: 2, kind: input, shape index: {}]
  %s3 = inlined_call_operand.hbm [shape: f32[2,768], index: 3, kind: output, shape index: {}]
  %s4 = sld [smem:[#allocation0]]
  $region57: #{tpu_custom_call.1} parent=0
    _
  %s6 = ssub.s32 1, %s4
  %s7 = scalar_select 0, %s6, %s4
  $region1: #{tpu_custom_call.1} parent=0
    #allocation2 [shape = 'u8[18432]{0}', space=vmem, size = 0x4800, scoped, tag = 'input window, operand 0, single buffered']
    #allocation3 [shape = 's32[2]{0}', space=sflag, size = 0x8, scoped, tag = 'scoped memory for tpu_custom_call.1']
    #allocation4 [shape = 's32[2]{0}', space=sflag, size = 0x8, scoped, tag = 'scoped memory for tpu_custom_call.1']
    #allocation5 [shape = 'u8[7077888]{0}', space=vmem, size = 0x6c0000, scoped, tag = 'input window, operand 1']
    #allocation6 [shape = 's32[2]{0}', space=sflag, size = 0x8, scoped, tag = 'scoped memory for tpu_custom_call.1']
    #allocation7 [shape = 'u8[3072]{0}', space=vmem, size = 0xc00, scoped, tag = 'input window, operand 2']
    #allocation8 [shape = 'u8[6144]{0}', space=vmem, size = 0x1800, scoped, tag = 'output window, operand 0']
    %8 = vsyncpa [#allocation3], 0
    %9 = vsyncpa [#allocation6], 0
    %s10 = scalar_lea.sflag [#allocation6], 1
    %11 = vsyncpa %s10, 0
    %12 = vsyncpa [#allocation4], 0
    %s13 = scalar_lea.sflag [#allocation4], 1
    %14 = vsyncpa %s13, 0
    loop: start=0, step=1, limit=4
    $region2: #{tpu_custom_call.1} parent=1 // loop_pre_header
      _
    $region3: #{tpu_custom_call.1} parent=1 // loop_header
      %s16 = sphi 0, %s20
      %p17 = scmp.ge.s32.totalorder %s16, 4
      %s24 = sphi 0, %s24
      %s26 = sphi 0, %s24
      %s27 = sphi 0, %s26
      %s41 = sphi 0, %s27
      %s47 = sphi 0, %s49
      %s50 = sphi 0, %s47
      %s51 = sphi 0, %s50
      %s67 = sphi 0, %s51
      %s73 = sphi 0, %s75
      %s76 = sphi 0, %s73
      %s77 = sphi 0, %s76
      %s93 = sphi 0, %s77
      %s99 = sphi 0, %s101
      %s102 = sphi 0, %s99
      %s103 = sphi 0, %s102
      %s119 = sphi 0, %s103
    $region4: #{tpu_custom_call.1} parent=1 // loop_header_branch
      %19 = sbr.rel (%p17) target = $region8
    $region5: #{tpu_custom_call.1} parent=1 // loop_body
      %s21 = ssub.s32 %s16, 1
      %s22 = ssub.s32 %s16, 2
      %s23 = sadd.s32 %s16, 1
      %s25 = sadd.s32 %s24, 1
      %p28 = scmp.eq.s32.totalorder %s16, 1
      %p29 = scmp.ne.s32.totalorder %s24, %s26
      %p30 = scmp.eq.s32.totalorder %s16, 0
      %p31 = por %p29, %p30
      %p32 = scmp.ne.s32.totalorder %s24, %s26
      %p33 = scmp.eq.s32.totalorder %s21, 1
      %p34 = por %p32, %p33
      %p35 = scmp.ne.s32.totalorder %s26, %s27
      %p36 = scmp.eq.s32.totalorder %s21, 0
      %p37 = por %p35, %p36
      %p38 = scmp.ne.s32.totalorder %s26, %s27
      %p39 = scmp.eq.s32.totalorder %s22, 1
      %p40 = por %p38, %p39
      %p42 = scmp.ne.s32.totalorder %s27, %s41
      %p43 = scmp.eq.s32.totalorder %s22, 0
      %p44 = por %p42, %p43
      %s45 = ssub.s32 %s16, %s23
      %p46 = scmp.eq.s32.totalorder %s45, 0
      %s48 = sadd.s32 %s47, 1
      %s49 = scalar_select %p46, %s47, %s48
      %p52 = pneg %p46
      %p53 = scmp.eq.s32.totalorder %s16, 1
      %p54 = por %p52, %p53
      %p55 = scmp.ne.s32.totalorder %s47, %s50
      %p56 = scmp.eq.s32.totalorder %s16, 0
      %p57 = por %p55, %p56
      %p58 = scmp.ne.s32.totalorder %s47, %s50
      %p59 = scmp.eq.s32.totalorder %s21, 1
      %p60 = por %p58, %p59
      %p61 = scmp.ne.s32.totalorder %s50, %s51
      %p62 = scmp.eq.s32.totalorder %s21, 0
      %p63 = por %p61, %p62
      %p64 = scmp.ne.s32.totalorder %s50, %s51
      %p65 = scmp.eq.s32.totalorder %s22, 1
      %p66 = por %p64, %p65
      %p68 = scmp.ne.s32.totalorder %s51, %s67
      %p69 = scmp.eq.s32.totalorder %s22, 0
      %p70 = por %p68, %p69
      %s71 = ssub.s32 %s16, %s23
      %p72 = scmp.eq.s32.totalorder %s71, 0
      %s74 = sadd.s32 %s73, 1
      %s75 = scalar_select %p72, %s73, %s74
      %p78 = pneg %p72
      %p79 = scmp.eq.s32.totalorder %s16, 1
      %p80 = por %p78, %p79
      %p81 = scmp.ne.s32.totalorder %s73, %s76
      %p82 = scmp.eq.s32.totalorder %s16, 0
      %p83 = por %p81, %p82
      %p84 = scmp.ne.s32.totalorder %s73, %s76
      %p85 = scmp.eq.s32.totalorder %s21, 1
      %p86 = por %p84, %p85
      %p87 = scmp.ne.s32.totalorder %s76, %s77
      %p88 = scmp.eq.s32.totalorder %s21, 0
      %p89 = por %p87, %p88
      %p90 = scmp.ne.s32.totalorder %s76, %s77
      %p91 = scmp.eq.s32.totalorder %s22, 1
      %p92 = por %p90, %p91
      %p94 = scmp.ne.s32.totalorder %s77, %s93
      %p95 = scmp.eq.s32.totalorder %s22, 0
      %p96 = por %p94, %p95
      %s97 = ssub.s32 %s16, %s23
      %p98 = scmp.eq.s32.totalorder %s97, 0
      %s100 = sadd.s32 %s99, 1
      %s101 = scalar_select %p98, %s99, %s100
      %p104 = pneg %p98
      %p105 = scmp.eq.s32.totalorder %s16, 1
      %p106 = por %p104, %p105
      %p107 = scmp.ne.s32.totalorder %s99, %s102
      %p108 = scmp.eq.s32.totalorder %s16, 0
      %p109 = por %p107, %p108
      %p110 = scmp.ne.s32.totalorder %s99, %s102
      %p111 = scmp.eq.s32.totalorder %s21, 1
      %p112 = por %p110, %p111
      %p113 = scmp.ne.s32.totalorder %s102, %s103
      %p114 = scmp.eq.s32.totalorder %s21, 0
      %p115 = por %p113, %p114
      %p116 = scmp.ne.s32.totalorder %s102, %s103
      %p117 = scmp.eq.s32.totalorder %s22, 1
      %p118 = por %p116, %p117
      %p120 = scmp.ne.s32.totalorder %s103, %s119
      %p121 = scmp.eq.s32.totalorder %s22, 0
      %p122 = por %p120, %p121
      %p123 = scmp.le.s32.totalorder 1, %s16
      %p124 = scmp.lt.s32.totalorder %s16, 3
      %p125 = pnand %p123, %p124
      %p126 = pneg %p125
      // Predicated region
      $region9: #{tpu_custom_call.1} parent=5 // pred_check
        _
      $region10: #{tpu_custom_call.1} parent=5 // pred_check_branch
        %128 = sbr.rel (%p125) target = $region12
      $region11: #{tpu_custom_call.1} parent=5 // pred_region
        %s129 = ssub.s32 %s16, 1
        // Predicated region
        $region13: #{tpu_custom_call.1} parent=11 // pred_check
          %p130 = pneg %p37
        $region14: #{tpu_custom_call.1} parent=11 // pred_check_branch
          %132 = sbr.rel (%p130) target = $region16
        $region15: #{tpu_custom_call.1} parent=11 // pred_region
          %134 = vsyncadd [#allocation3], 0
          %s136 = sshll.u32 %s0, 4
          %s137 = int_to_ptr.hbm [resolvable:$true] %s136
          %s138 = sshll.u32 [#allocation2], 4
          %s139 = int_to_ptr.vmem [resolvable:$true] %s138
          %141 = dma.hbm_to_vmem [thread:$0]  %s137, 576, %s139, [#allocation3]
        $region16: #{tpu_custom_call.1} parent=11 // pred_fallthru
          _
      $region12: #{tpu_custom_call.1} parent=5 // pred_fallthru
        _
      %p142 = scmp.lt.s32.totalorder %s16, 2
      // Predicated region
      $region17: #{tpu_custom_call.1} parent=5 // pred_check
        %p143 = pneg %p142
      $region18: #{tpu_custom_call.1} parent=5 // pred_check_branch
        %145 = sbr.rel (%p143) target = $region20
      $region19: #{tpu_custom_call.1} parent=5 // pred_region
        // Predicated region
        $region21: #{tpu_custom_call.1} parent=19 // pred_check
          %p146 = pneg %p57
        $region22: #{tpu_custom_call.1} parent=19 // pred_check_branch
          %148 = sbr.rel (%p146) target = $region24
        $region23: #{tpu_custom_call.1} parent=19 // pred_region
          %s149 = sand.u32 %s16, 1
          %s150 = scalar_lea.sflag [#allocation6], %s149
          %s151 = sand.u32 %s47, 1
          %s152 = smul.addr %s151, 6912
          %s153 = scalar_lea.vmem [#allocation5], %s152
          %s154 = smul.u32 3, %s16
          %156 = vsyncadd %s150, 0
          %s157 = smul.addr %s154, 8
          %s158 = scalar_lea.hbm %s1, %s157
          %s159 = sshll.u32 %s158, 4
          %s160 = int_to_ptr.hbm [resolvable:$true] %s159
          %s161 = sshll.u32 %s153, 4
          %s162 = int_to_ptr.vmem [resolvable:$true] %s161
          %167 = dma.hbm_to_vmem [thread:$0]  %s160, 110592, %s162, %s150, 768, 384, 24
        $region24: #{tpu_custom_call.1} parent=19 // pred_fallthru
          _
        // Predicated region
        $region25: #{tpu_custom_call.1} parent=19 // pred_check
          %p168 = pneg %p83
        $region26: #{tpu_custom_call.1} parent=19 // pred_check_branch
          %170 = sbr.rel (%p168) target = $region28
        $region27: #{tpu_custom_call.1} parent=19 // pred_region
          %s171 = sand.u32 %s16, 1
          %s172 = scalar_lea.sflag [#allocation6], %s171
          %s173 = sand.u32 %s73, 1
          %s174 = smul.addr %s173, 3
          %s175 = scalar_lea.vmem [#allocation7], %s174
          %s176 = smul.u32 3, %s16
          %178 = vsyncadd %s172, 0
          %s179 = scalar_lea.hbm %s2, %s176
          %s181 = sshll.u32 %s179, 4
          %s182 = int_to_ptr.hbm [resolvable:$true] %s181
          %s183 = sshll.u32 %s175, 4
          %s184 = int_to_ptr.vmem [resolvable:$true] %s183
          %186 = dma.hbm_to_vmem [thread:$0]  %s182, 48, %s184, %s172
        $region28: #{tpu_custom_call.1} parent=19 // pred_fallthru
          _
      $region20: #{tpu_custom_call.1} parent=5 // pred_fallthru
        _
      %p187 = scmp.le.s32.totalorder 1, %s16
      %p188 = scmp.lt.s32.totalorder %s16, 3
      %p189 = pnand %p187, %p188
      %p190 = pneg %p189
      // Predicated region
      $region29: #{tpu_custom_call.1} parent=5 // pred_check
        _
      $region30: #{tpu_custom_call.1} parent=5 // pred_check_branch
        %192 = sbr.rel (%p189) target = $region32
      $region31: #{tpu_custom_call.1} parent=5 // pred_region
        %s193 = ssub.s32 %s16, 1
        // Predicated region
        $region33: #{tpu_custom_call.1} parent=31 // pred_check
          %p194 = pneg %p37
        $region34: #{tpu_custom_call.1} parent=31 // pred_check_branch
          %196 = sbr.rel (%p194) target = $region36
        $region35: #{tpu_custom_call.1} parent=31 // pred_region
          %198 = dma.done [#allocation3], 576
        $region36: #{tpu_custom_call.1} parent=31 // pred_fallthru
          _
        %s199 = sand.u32 %s21, 1
        %s200 = scalar_lea.sflag [#allocation6], %s199
        %s201 = sand.u32 %s50, 1
        %s202 = smul.addr %s201, 6912
        %s203 = scalar_lea.vmem [#allocation5], %s202
        // Predicated region
        $region37: #{tpu_custom_call.1} parent=31 // pred_check
          %p204 = pneg %p63
        $region38: #{tpu_custom_call.1} parent=31 // pred_check_branch
          %206 = sbr.rel (%p204) target = $region40
        $region39: #{tpu_custom_call.1} parent=31 // pred_region
          %208 = dma.done %s200, 110592
        $region40: #{tpu_custom_call.1} parent=31 // pred_fallthru
          _
        %s209 = sand.u32 %s21, 1
        %s210 = scalar_lea.sflag [#allocation6], %s209
        %s211 = sand.u32 %s76, 1
        %s212 = smul.addr %s211, 3
        %s213 = scalar_lea.vmem [#allocation7], %s212
        // Predicated region
        $region41: #{tpu_custom_call.1} parent=31 // pred_check
          %p214 = pneg %p89
        $region42: #{tpu_custom_call.1} parent=31 // pred_check_branch
          %216 = sbr.rel (%p214) target = $region44
        $region43: #{tpu_custom_call.1} parent=31 // pred_region
          %218 = dma.done %s210, 48
        $region44: #{tpu_custom_call.1} parent=31 // pred_fallthru
          _
        %p219 = pneg %p37
        %p220 = pneg %p34
        %s221 = sand.u32 %s21, 1
        %s222 = scalar_lea.sflag [#allocation6], %s221
        %s223 = sand.u32 %s50, 1
        %s224 = smul.addr %s223, 6912
        %s225 = scalar_lea.vmem [#allocation5], %s224
        %p226 = pneg %p63
        %p227 = pneg %p60
        %s228 = sand.u32 %s21, 1
        %s229 = scalar_lea.sflag [#allocation6], %s228
        %s230 = sand.u32 %s76, 1
        %s231 = smul.addr %s230, 3
        %s232 = scalar_lea.vmem [#allocation7], %s231
        %p233 = pneg %p89
        %p234 = pneg %p86
        %p235 = pneg %p115
        %p236 = pneg %p112
        %s237 = sand.u32 %s102, 1
        %s238 = scalar_lea.sflag [#allocation4], %s237
        %s239 = sand.u32 %s102, 1
        %s240 = smul.addr %s239, 6
        %s241 = scalar_lea.vmem [#allocation8], %s240
        %s242 = smul.u32 3, %s21
        %s243 = smul.u32 3, %s21
        %s244 = smul.u32 3, %s21
        %v245 = vld [vmem:[#allocation2] sm:$0xff]
        %v246 = vld [vmem:[#allocation2 + $0x8] sm:$0xff]
        %v247 = vld [vmem:[#allocation2 + $0x10] sm:$0xff]
        %v248 = vld [vmem:[#allocation2 + $0x18] sm:$0xff]
        %v249 = vld [vmem:[#allocation2 + $0x20] sm:$0xf]
        %v250 = vld [vmem:[%s203] sm:$0xff]
        %v251 = vld [vmem:[%s203 + $0x8] sm:$0xff]
        %v252 = vld [vmem:[%s203 + $0x10] sm:$0xff]
        %v253 = vld [vmem:[%s203 + $0x18] sm:$0xff]
        %v254 = vld [vmem:[%s203 + $0x20] sm:$0xff]
        %v255 = vld [vmem:[%s203 + $0x28] sm:$0xff]
        %v256 = vld [vmem:[%s203 + $0x30] sm:$0xff]
        %v257 = vld [vmem:[%s203 + $0x38] sm:$0xff]
        %v258 = vld [vmem:[%s203 + $0x40] sm:$0xff]
        %v259 = vld [vmem:[%s203 + $0x48] sm:$0xff]
        %v260 = vld [vmem:[%s203 + $0x50] sm:$0xff]
        %v261 = vld [vmem:[%s203 + $0x58] sm:$0xff]
        %v262 = vld [vmem:[%s203 + $0x60] sm:$0xff]
        %v263 = vld [vmem:[%s203 + $0x68] sm:$0xff]
        %v264 = vld [vmem:[%s203 + $0x70] sm:$0xff]
        %v265 = vld [vmem:[%s203 + $0x78] sm:$0xff]
        %v266 = vld [vmem:[%s203 + $0x80] sm:$0xff]
        %v267 = vld [vmem:[%s203 + $0x88] sm:$0xff]
        %v268 = vld [vmem:[%s203 + $0x90] sm:$0xff]
        %v269 = vld [vmem:[%s203 + $0x98] sm:$0xff]
        %v270 = vld [vmem:[%s203 + $0xa0] sm:$0xff]
        %v271 = vld [vmem:[%s203 + $0xa8] sm:$0xff]
        %v272 = vld [vmem:[%s203 + $0xb0] sm:$0xff]
        %v273 = vld [vmem:[%s203 + $0xb8] sm:$0xff]
        %v274 = vld [vmem:[%s203 + $0xc0] sm:$0xff]
        %v275 = vld [vmem:[%s203 + $0xc8] sm:$0xff]
        %v276 = vld [vmem:[%s203 + $0xd0] sm:$0xff]
        %v277 = vld [vmem:[%s203 + $0xd8] sm:$0xff]
        %v278 = vld [vmem:[%s203 + $0xe0] sm:$0xff]
        %v279 = vld [vmem:[%s203 + $0xe8] sm:$0xff]
        %v280 = vld [vmem:[%s203 + $0xf0] sm:$0xff]
        %v281 = vld [vmem:[%s203 + $0xf8] sm:$0xff]
        %v282 = vld [vmem:[%s203 + $0x100] sm:$0xff]
        %v283 = vld [vmem:[%s203 + $0x108] sm:$0xff]
        %v284 = vld [vmem:[%s203 + $0x110] sm:$0xff]
        %v285 = vld [vmem:[%s203 + $0x118] sm:$0xff]
        %v286 = vld [vmem:[%s203 + $0x120] sm:$0xff]
        %v287 = vld [vmem:[%s203 + $0x128] sm:$0xff]
        %v288 = vld [vmem:[%s203 + $0x130] sm:$0xff]
        %v289 = vld [vmem:[%s203 + $0x138] sm:$0xff]
        %v290 = vld [vmem:[%s203 + $0x140] sm:$0xff]
        %v291 = vld [vmem:[%s203 + $0x148] sm:$0xff]
        %v292 = vld [vmem:[%s203 + $0x150] sm:$0xff]
        %v293 = vld [vmem:[%s203 + $0x158] sm:$0xff]
        %v294 = vld [vmem:[%s203 + $0x160] sm:$0xff]
        %v295 = vld [vmem:[%s203 + $0x168] sm:$0xff]
        %v296 = vld [vmem:[%s203 + $0x170] sm:$0xff]
        %v297 = vld [vmem:[%s203 + $0x178] sm:$0xff]
        %v298 = vld [vmem:[%s203 + $0x180] sm:$0xff]
        %v299 = vld [vmem:[%s203 + $0x188] sm:$0xff]
        %v300 = vld [vmem:[%s203 + $0x190] sm:$0xff]
        %v301 = vld [vmem:[%s203 + $0x198] sm:$0xff]
        %v302 = vld [vmem:[%s203 + $0x1a0] sm:$0xff]
        %v303 = vld [vmem:[%s203 + $0x1a8] sm:$0xff]
        %v304 = vld [vmem:[%s203 + $0x1b0] sm:$0xff]
        %v305 = vld [vmem:[%s203 + $0x1b8] sm:$0xff]
        %v306 = vld [vmem:[%s203 + $0x1c0] sm:$0xff]
        %v307 = vld [vmem:[%s203 + $0x1c8] sm:$0xff]
        %v308 = vld [vmem:[%s203 + $0x1d0] sm:$0xff]
        %v309 = vld [vmem:[%s203 + $0x1d8] sm:$0xff]
        %v310 = vld [vmem:[%s203 + $0x1e0] sm:$0xff]
        %v311 = vld [vmem:[%s203 + $0x1e8] sm:$0xff]
        %v312 = vld [vmem:[%s203 + $0x1f0] sm:$0xff]
        %v313 = vld [vmem:[%s203 + $0x1f8] sm:$0xff]
        %v314 = vld [vmem:[%s203 + $0x200] sm:$0xff]
        %v315 = vld [vmem:[%s203 + $0x208] sm:$0xff]
        %v316 = vld [vmem:[%s203 + $0x210] sm:$0xff]
        %v317 = vld [vmem:[%s203 + $0x218] sm:$0xff]
        %v318 = vld [vmem:[%s203 + $0x220] sm:$0xff]
        %v319 = vld [vmem:[%s203 + $0x228] sm:$0xff]
        %v320 = vld [vmem:[%s203 + $0x230] sm:$0xff]
        %v321 = vld [vmem:[%s203 + $0x238] sm:$0xff]
        %v322 = vld [vmem:[%s203 + $0x240] sm:$0xff]
        %v323 = vld [vmem:[%s203 + $0x248] sm:$0xff]
        %v324 = vld [vmem:[%s203 + $0x250] sm:$0xff]
        %v325 = vld [vmem:[%s203 + $0x258] sm:$0xff]
        %v326 = vld [vmem:[%s203 + $0x260] sm:$0xff]
        %v327 = vld [vmem:[%s203 + $0x268] sm:$0xff]
        %v328 = vld [vmem:[%s203 + $0x270] sm:$0xff]
        %v329 = vld [vmem:[%s203 + $0x278] sm:$0xff]
        %v330 = vld [vmem:[%s203 + $0x280] sm:$0xff]
        %v331 = vld [vmem:[%s203 + $0x288] sm:$0xff]
        %v332 = vld [vmem:[%s203 + $0x290] sm:$0xff]
        %v333 = vld [vmem:[%s203 + $0x298] sm:$0xff]
        %v334 = vld [vmem:[%s203 + $0x2a0] sm:$0xff]
        %v335 = vld [vmem:[%s203 + $0x2a8] sm:$0xff]
        %v336 = vld [vmem:[%s203 + $0x2b0] sm:$0xff]
        %v337 = vld [vmem:[%s203 + $0x2b8] sm:$0xff]
        %v338 = vld [vmem:[%s203 + $0x2c0] sm:$0xff]
        %v339 = vld [vmem:[%s203 + $0x2c8] sm:$0xff]
        %v340 = vld [vmem:[%s203 + $0x2d0] sm:$0xff]
        %v341 = vld [vmem:[%s203 + $0x2d8] sm:$0xff]
        %v342 = vld [vmem:[%s203 + $0x2e0] sm:$0xff]
        %v343 = vld [vmem:[%s203 + $0x2e8] sm:$0xff]
        %v344 = vld [vmem:[%s203 + $0x2f0] sm:$0xff]
        %v345 = vld [vmem:[%s203 + $0x2f8] sm:$0xff]
        %v346 = vld [vmem:[%s203 + $0x300] sm:$0xff]
        %v347 = vld [vmem:[%s203 + $0x308] sm:$0xff]
        %v348 = vld [vmem:[%s203 + $0x310] sm:$0xff]
        %v349 = vld [vmem:[%s203 + $0x318] sm:$0xff]
        %v350 = vld [vmem:[%s203 + $0x320] sm:$0xff]
        %v351 = vld [vmem:[%s203 + $0x328] sm:$0xff]
        %v352 = vld [vmem:[%s203 + $0x330] sm:$0xff]
        %v353 = vld [vmem:[%s203 + $0x338] sm:$0xff]
        %v354 = vld [vmem:[%s203 + $0x340] sm:$0xff]
        %v355 = vld [vmem:[%s203 + $0x348] sm:$0xff]
        %v356 = vld [vmem:[%s203 + $0x350] sm:$0xff]
        %v357 = vld [vmem:[%s203 + $0x358] sm:$0xff]
        %v358 = vld [vmem:[%s203 + $0x360] sm:$0xff]
        %v359 = vld [vmem:[%s203 + $0x368] sm:$0xff]
        %v360 = vld [vmem:[%s203 + $0x370] sm:$0xff]
        %v361 = vld [vmem:[%s203 + $0x378] sm:$0xff]
        %v362 = vld [vmem:[%s203 + $0x380] sm:$0xff]
        %v363 = vld [vmem:[%s203 + $0x388] sm:$0xff]
        %v364 = vld [vmem:[%s203 + $0x390] sm:$0xff]
        %v365 = vld [vmem:[%s203 + $0x398] sm:$0xff]
        %v366 = vld [vmem:[%s203 + $0x3a0] sm:$0xff]
        %v367 = vld [vmem:[%s203 + $0x3a8] sm:$0xff]
        %v368 = vld [vmem:[%s203 + $0x3b0] sm:$0xff]
        %v369 = vld [vmem:[%s203 + $0x3b8] sm:$0xff]
        %v370 = vld [vmem:[%s203 + $0x3c0] sm:$0xff]
        %v371 = vld [vmem:[%s203 + $0x3c8] sm:$0xff]
        %v372 = vld [vmem:[%s203 + $0x3d0] sm:$0xff]
        %v373 = vld [vmem:[%s203 + $0x3d8] sm:$0xff]
        %v374 = vld [vmem:[%s203 + $0x3e0] sm:$0xff]
        %v375 = vld [vmem:[%s203 + $0x3e8] sm:$0xff]
        %v376 = vld [vmem:[%s203 + $0x3f0] sm:$0xff]
        %v377 = vld [vmem:[%s203 + $0x3f8] sm:$0xff]
        %v378 = vld [vmem:[%s203 + $0x400] sm:$0xff]
        %v379 = vld [vmem:[%s203 + $0x408] sm:$0xff]
        %v380 = vld [vmem:[%s203 + $0x410] sm:$0xff]
        %v381 = vld [vmem:[%s203 + $0x418] sm:$0xff]
        %v382 = vld [vmem:[%s203 + $0x420] sm:$0xff]
        %v383 = vld [vmem:[%s203 + $0x428] sm:$0xff]
        %v384 = vld [vmem:[%s203 + $0x430] sm:$0xff]
        %v385 = vld [vmem:[%s203 + $0x438] sm:$0xff]
        %v386 = vld [vmem:[%s203 + $0x440] sm:$0xff]
        %v387 = vld [vmem:[%s203 + $0x448] sm:$0xff]
        %v388 = vld [vmem:[%s203 + $0x450] sm:$0xff]
        %v389 = vld [vmem:[%s203 + $0x458] sm:$0xff]
        %v390 = vld [vmem:[%s203 + $0x460] sm:$0xff]
        %v391 = vld [vmem:[%s203 + $0x468] sm:$0xff]
        %v392 = vld [vmem:[%s203 + $0x470] sm:$0xff]
        %v393 = vld [vmem:[%s203 + $0x478] sm:$0xff]
        %v394 = vld [vmem:[%s203 + $0x480] sm:$0xff]
        %v395 = vld [vmem:[%s203 + $0x488] sm:$0xff]
        %v396 = vld [vmem:[%s203 + $0x490] sm:$0xff]
        %v397 = vld [vmem:[%s203 + $0x498] sm:$0xff]
        %v398 = vld [vmem:[%s203 + $0x4a0] sm:$0xff]
        %v399 = vld [vmem:[%s203 + $0x4a8] sm:$0xff]
        %v400 = vld [vmem:[%s203 + $0x4b0] sm:$0xff]
        %v401 = vld [vmem:[%s203 + $0x4b8] sm:$0xff]
        %v402 = vld [vmem:[%s203 + $0x4c0] sm:$0xff]
        %v403 = vld [vmem:[%s203 + $0x4c8] sm:$0xff]
        %v404 = vld [vmem:[%s203 + $0x4d0] sm:$0xff]
        %v405 = vld [vmem:[%s203 + $0x4d8] sm:$0xff]
        %v406 = vld [vmem:[%s203 + $0x4e0] sm:$0xff]
        %v407 = vld [vmem:[%s203 + $0x4e8] sm:$0xff]
        %v408 = vld [vmem:[%s203 + $0x4f0] sm:$0xff]
        %v409 = vld [vmem:[%s203 + $0x4f8] sm:$0xff]
        %v410 = vld [vmem:[%s203 + $0x500] sm:$0xff]
        %v411 = vld [vmem:[%s203 + $0x508] sm:$0xff]
        %v412 = vld [vmem:[%s203 + $0x510] sm:$0xff]
        %v413 = vld [vmem:[%s203 + $0x518] sm:$0xff]
        %v414 = vld [vmem:[%s203 + $0x520] sm:$0xff]
        %v415 = vld [vmem:[%s203 + $0x528] sm:$0xff]
        %v416 = vld [vmem:[%s203 + $0x530] sm:$0xff]
        %v417 = vld [vmem:[%s203 + $0x538] sm:$0xff]
        %v418 = vld [vmem:[%s203 + $0x540] sm:$0xff]
        %v419 = vld [vmem:[%s203 + $0x548] sm:$0xff]
        %v420 = vld [vmem:[%s203 + $0x550] sm:$0xff]
        %v421 = vld [vmem:[%s203 + $0x558] sm:$0xff]
        %v422 = vld [vmem:[%s203 + $0x560] sm:$0xff]
        %v423 = vld [vmem:[%s203 + $0x568] sm:$0xff]
        %v424 = vld [vmem:[%s203 + $0x570] sm:$0xff]
        %v425 = vld [vmem:[%s203 + $0x578] sm:$0xff]
        %v426 = vld [vmem:[%s203 + $0x580] sm:$0xff]
        %v427 = vld [vmem:[%s203 + $0x588] sm:$0xff]
        %v428 = vld [vmem:[%s203 + $0x590] sm:$0xff]
        %v429 = vld [vmem:[%s203 + $0x598] sm:$0xff]
        %v430 = vld [vmem:[%s203 + $0x5a0] sm:$0xff]
        %v431 = vld [vmem:[%s203 + $0x5a8] sm:$0xff]
        %v432 = vld [vmem:[%s203 + $0x5b0] sm:$0xff]
        %v433 = vld [vmem:[%s203 + $0x5b8] sm:$0xff]
        %v434 = vld [vmem:[%s203 + $0x5c0] sm:$0xff]
        %v435 = vld [vmem:[%s203 + $0x5c8] sm:$0xff]
        %v436 = vld [vmem:[%s203 + $0x5d0] sm:$0xff]
        %v437 = vld [vmem:[%s203 + $0x5d8] sm:$0xff]
        %v438 = vld [vmem:[%s203 + $0x5e0] sm:$0xff]
        %v439 = vld [vmem:[%s203 + $0x5e8] sm:$0xff]
        %v440 = vld [vmem:[%s203 + $0x5f0] sm:$0xff]
        %v441 = vld [vmem:[%s203 + $0x5f8] sm:$0xff]
        %v442 = vld [vmem:[%s203 + $0x600] sm:$0xff]
        %v443 = vld [vmem:[%s203 + $0x608] sm:$0xff]
        %v444 = vld [vmem:[%s203 + $0x610] sm:$0xff]
        %v445 = vld [vmem:[%s203 + $0x618] sm:$0xff]
        %v446 = vld [vmem:[%s203 + $0x620] sm:$0xff]
        %v447 = vld [vmem:[%s203 + $0x628] sm:$0xff]
        %v448 = vld [vmem:[%s203 + $0x630] sm:$0xff]
        %v449 = vld [vmem:[%s203 + $0x638] sm:$0xff]
        %v450 = vld [vmem:[%s203 + $0x640] sm:$0xff]
        %v451 = vld [vmem:[%s203 + $0x648] sm:$0xff]
        %v452 = vld [vmem:[%s203 + $0x650] sm:$0xff]
        %v453 = vld [vmem:[%s203 + $0x658] sm:$0xff]
        %v454 = vld [vmem:[%s203 + $0x660] sm:$0xff]
        %v455 = vld [vmem:[%s203 + $0x668] sm:$0xff]
        %v456 = vld [vmem:[%s203 + $0x670] sm:$0xff]
        %v457 = vld [vmem:[%s203 + $0x678] sm:$0xff]
        %v458 = vld [vmem:[%s203 + $0x680] sm:$0xff]
        %v459 = vld [vmem:[%s203 + $0x688] sm:$0xff]
        %v460 = vld [vmem:[%s203 + $0x690] sm:$0xff]
        %v461 = vld [vmem:[%s203 + $0x698] sm:$0xff]
        %v462 = vld [vmem:[%s203 + $0x6a0] sm:$0xff]
        %v463 = vld [vmem:[%s203 + $0x6a8] sm:$0xff]
        %v464 = vld [vmem:[%s203 + $0x6b0] sm:$0xff]
        %v465 = vld [vmem:[%s203 + $0x6b8] sm:$0xff]
        %v466 = vld [vmem:[%s203 + $0x6c0] sm:$0xff]
        %v467 = vld [vmem:[%s203 + $0x6c8] sm:$0xff]
        %v468 = vld [vmem:[%s203 + $0x6d0] sm:$0xff]
        %v469 = vld [vmem:[%s203 + $0x6d8] sm:$0xff]
        %v470 = vld [vmem:[%s203 + $0x6e0] sm:$0xff]
        %v471 = vld [vmem:[%s203 + $0x6e8] sm:$0xff]
        %v472 = vld [vmem:[%s203 + $0x6f0] sm:$0xff]
        %v473 = vld [vmem:[%s203 + $0x6f8] sm:$0xff]
        %v474 = vld [vmem:[%s203 + $0x700] sm:$0xff]
        %v475 = vld [vmem:[%s203 + $0x708] sm:$0xff]
        %v476 = vld [vmem:[%s203 + $0x710] sm:$0xff]
        %v477 = vld [vmem:[%s203 + $0x718] sm:$0xff]
        %v478 = vld [vmem:[%s203 + $0x720] sm:$0xff]
        %v479 = vld [vmem:[%s203 + $0x728] sm:$0xff]
        %v480 = vld [vmem:[%s203 + $0x730] sm:$0xff]
        %v481 = vld [vmem:[%s203 + $0x738] sm:$0xff]
        %v482 = vld [vmem:[%s203 + $0x740] sm:$0xff]
        %v483 = vld [vmem:[%s203 + $0x748] sm:$0xff]
        %v484 = vld [vmem:[%s203 + $0x750] sm:$0xff]
        %v485 = vld [vmem:[%s203 + $0x758] sm:$0xff]
        %v486 = vld [vmem:[%s203 + $0x760] sm:$0xff]
        %v487 = vld [vmem:[%s203 + $0x768] sm:$0xff]
        %v488 = vld [vmem:[%s203 + $0x770] sm:$0xff]
        %v489 = vld [vmem:[%s203 + $0x778] sm:$0xff]
        %v490 = vld [vmem:[%s203 + $0x780] sm:$0xff]
        %v491 = vld [vmem:[%s203 + $0x788] sm:$0xff]
        %v492 = vld [vmem:[%s203 + $0x790] sm:$0xff]
        %v493 = vld [vmem:[%s203 + $0x798] sm:$0xff]
        %v494 = vld [vmem:[%s203 + $0x7a0] sm:$0xff]
        %v495 = vld [vmem:[%s203 + $0x7a8] sm:$0xff]
        %v496 = vld [vmem:[%s203 + $0x7b0] sm:$0xff]
        %v497 = vld [vmem:[%s203 + $0x7b8] sm:$0xff]
        %v498 = vld [vmem:[%s203 + $0x7c0] sm:$0xff]
        %v499 = vld [vmem:[%s203 + $0x7c8] sm:$0xff]
        %v500 = vld [vmem:[%s203 + $0x7d0] sm:$0xff]
        %v501 = vld [vmem:[%s203 + $0x7d8] sm:$0xff]
        %v502 = vld [vmem:[%s203 + $0x7e0] sm:$0xff]
        %v503 = vld [vmem:[%s203 + $0x7e8] sm:$0xff]
        %v504 = vld [vmem:[%s203 + $0x7f0] sm:$0xff]
        %v505 = vld [vmem:[%s203 + $0x7f8] sm:$0xff]
        %v506 = vld [vmem:[%s203 + $0x800] sm:$0xff]
        %v507 = vld [vmem:[%s203 + $0x808] sm:$0xff]
        %v508 = vld [vmem:[%s203 + $0x810] sm:$0xff]
        %v509 = vld [vmem:[%s203 + $0x818] sm:$0xff]
        %v510 = vld [vmem:[%s203 + $0x820] sm:$0xff]
        %v511 = vld [vmem:[%s203 + $0x828] sm:$0xff]
        %v512 = vld [vmem:[%s203 + $0x830] sm:$0xff]
        %v513 = vld [vmem:[%s203 + $0x838] sm:$0xff]
        %v514 = vld [vmem:[%s203 + $0x840] sm:$0xff]
        %v515 = vld [vmem:[%s203 + $0x848] sm:$0xff]
        %v516 = vld [vmem:[%s203 + $0x850] sm:$0xff]
        %v517 = vld [vmem:[%s203 + $0x858] sm:$0xff]
        %v518 = vld [vmem:[%s203 + $0x860] sm:$0xff]
        %v519 = vld [vmem:[%s203 + $0x868] sm:$0xff]
        %v520 = vld [vmem:[%s203 + $0x870] sm:$0xff]
        %v521 = vld [vmem:[%s203 + $0x878] sm:$0xff]
        %v522 = vld [vmem:[%s203 + $0x880] sm:$0xff]
        %v523 = vld [vmem:[%s203 + $0x888] sm:$0xff]
        %v524 = vld [vmem:[%s203 + $0x890] sm:$0xff]
        %v525 = vld [vmem:[%s203 + $0x898] sm:$0xff]
        %v526 = vld [vmem:[%s203 + $0x8a0] sm:$0xff]
        %v527 = vld [vmem:[%s203 + $0x8a8] sm:$0xff]
        %v528 = vld [vmem:[%s203 + $0x8b0] sm:$0xff]
        %v529 = vld [vmem:[%s203 + $0x8b8] sm:$0xff]
        %v530 = vld [vmem:[%s203 + $0x8c0] sm:$0xff]
        %v531 = vld [vmem:[%s203 + $0x8c8] sm:$0xff]
        %v532 = vld [vmem:[%s203 + $0x8d0] sm:$0xff]
        %v533 = vld [vmem:[%s203 + $0x8d8] sm:$0xff]
        %v534 = vld [vmem:[%s203 + $0x8e0] sm:$0xff]
        %v535 = vld [vmem:[%s203 + $0x8e8] sm:$0xff]
        %v536 = vld [vmem:[%s203 + $0x8f0] sm:$0xff]
        %v537 = vld [vmem:[%s203 + $0x8f8] sm:$0xff]
        %v538 = vld [vmem:[%s203 + $0x900] sm:$0xff]
        %v539 = vld [vmem:[%s203 + $0x908] sm:$0xff]
        %v540 = vld [vmem:[%s203 + $0x910] sm:$0xff]
        %v541 = vld [vmem:[%s203 + $0x918] sm:$0xff]
        %v542 = vld [vmem:[%s203 + $0x920] sm:$0xff]
        %v543 = vld [vmem:[%s203 + $0x928] sm:$0xff]
        %v544 = vld [vmem:[%s203 + $0x930] sm:$0xff]
        %v545 = vld [vmem:[%s203 + $0x938] sm:$0xff]
        %v546 = vld [vmem:[%s203 + $0x940] sm:$0xff]
        %v547 = vld [vmem:[%s203 + $0x948] sm:$0xff]
        %v548 = vld [vmem:[%s203 + $0x950] sm:$0xff]
        %v549 = vld [vmem:[%s203 + $0x958] sm:$0xff]
        %v550 = vld [vmem:[%s203 + $0x960] sm:$0xff]
        %v551 = vld [vmem:[%s203 + $0x968] sm:$0xff]
        %v552 = vld [vmem:[%s203 + $0x970] sm:$0xff]
        %v553 = vld [vmem:[%s203 + $0x978] sm:$0xff]
        %v554 = vld [vmem:[%s203 + $0x980] sm:$0xff]
        %v555 = vld [vmem:[%s203 + $0x988] sm:$0xff]
        %v556 = vld [vmem:[%s203 + $0x990] sm:$0xff]
        %v557 = vld [vmem:[%s203 + $0x998] sm:$0xff]
        %v558 = vld [vmem:[%s203 + $0x9a0] sm:$0xff]
        %v559 = vld [vmem:[%s203 + $0x9a8] sm:$0xff]
        %v560 = vld [vmem:[%s203 + $0x9b0] sm:$0xff]
        %v561 = vld [vmem:[%s203 + $0x9b8] sm:$0xff]
        %v562 = vld [vmem:[%s203 + $0x9c0] sm:$0xff]
        %v563 = vld [vmem:[%s203 + $0x9c8] sm:$0xff]
        %v564 = vld [vmem:[%s203 + $0x9d0] sm:$0xff]
        %v565 = vld [vmem:[%s203 + $0x9d8] sm:$0xff]
        %v566 = vld [vmem:[%s203 + $0x9e0] sm:$0xff]
        %v567 = vld [vmem:[%s203 + $0x9e8] sm:$0xff]
        %v568 = vld [vmem:[%s203 + $0x9f0] sm:$0xff]
        %v569 = vld [vmem:[%s203 + $0x9f8] sm:$0xff]
        %v570 = vld [vmem:[%s203 + $0xa00] sm:$0xff]
        %v571 = vld [vmem:[%s203 + $0xa08] sm:$0xff]
        %v572 = vld [vmem:[%s203 + $0xa10] sm:$0xff]
        %v573 = vld [vmem:[%s203 + $0xa18] sm:$0xff]
        %v574 = vld [vmem:[%s203 + $0xa20] sm:$0xff]
        %v575 = vld [vmem:[%s203 + $0xa28] sm:$0xff]
        %v576 = vld [vmem:[%s203 + $0xa30] sm:$0xff]
        %v577 = vld [vmem:[%s203 + $0xa38] sm:$0xff]
        %v578 = vld [vmem:[%s203 + $0xa40] sm:$0xff]
        %v579 = vld [vmem:[%s203 + $0xa48] sm:$0xff]
        %v580 = vld [vmem:[%s203 + $0xa50] sm:$0xff]
        %v581 = vld [vmem:[%s203 + $0xa58] sm:$0xff]
        %v582 = vld [vmem:[%s203 + $0xa60] sm:$0xff]
        %v583 = vld [vmem:[%s203 + $0xa68] sm:$0xff]
        %v584 = vld [vmem:[%s203 + $0xa70] sm:$0xff]
        %v585 = vld [vmem:[%s203 + $0xa78] sm:$0xff]
        %v586 = vld [vmem:[%s203 + $0xa80] sm:$0xff]
        %v587 = vld [vmem:[%s203 + $0xa88] sm:$0xff]
        %v588 = vld [vmem:[%s203 + $0xa90] sm:$0xff]
        %v589 = vld [vmem:[%s203 + $0xa98] sm:$0xff]
        %v590 = vld [vmem:[%s203 + $0xaa0] sm:$0xff]
        %v591 = vld [vmem:[%s203 + $0xaa8] sm:$0xff]
        %v592 = vld [vmem:[%s203 + $0xab0] sm:$0xff]
        %v593 = vld [vmem:[%s203 + $0xab8] sm:$0xff]
        %v594 = vld [vmem:[%s203 + $0xac0] sm:$0xff]
        %v595 = vld [vmem:[%s203 + $0xac8] sm:$0xff]
        %v596 = vld [vmem:[%s203 + $0xad0] sm:$0xff]
        %v597 = vld [vmem:[%s203 + $0xad8] sm:$0xff]
        %v598 = vld [vmem:[%s203 + $0xae0] sm:$0xff]
        %v599 = vld [vmem:[%s203 + $0xae8] sm:$0xff]
        %v600 = vld [vmem:[%s203 + $0xaf0] sm:$0xff]
        %v601 = vld [vmem:[%s203 + $0xaf8] sm:$0xff]
        %v602 = vld [vmem:[%s203 + $0xb00] sm:$0xff]
        %v603 = vld [vmem:[%s203 + $0xb08] sm:$0xff]
        %v604 = vld [vmem:[%s203 + $0xb10] sm:$0xff]
        %v605 = vld [vmem:[%s203 + $0xb18] sm:$0xff]
        %v606 = vld [vmem:[%s203 + $0xb20] sm:$0xff]
        %v607 = vld [vmem:[%s203 + $0xb28] sm:$0xff]
        %v608 = vld [vmem:[%s203 + $0xb30] sm:$0xff]
        %v609 = vld [vmem:[%s203 + $0xb38] sm:$0xff]
        %v610 = vld [vmem:[%s203 + $0xb40] sm:$0xff]
        %v611 = vld [vmem:[%s203 + $0xb48] sm:$0xff]
        %v612 = vld [vmem:[%s203 + $0xb50] sm:$0xff]
        %v613 = vld [vmem:[%s203 + $0xb58] sm:$0xff]
        %v614 = vld [vmem:[%s203 + $0xb60] sm:$0xff]
        %v615 = vld [vmem:[%s203 + $0xb68] sm:$0xff]
        %v616 = vld [vmem:[%s203 + $0xb70] sm:$0xff]
        %v617 = vld [vmem:[%s203 + $0xb78] sm:$0xff]
        %v618 = vld [vmem:[%s203 + $0xb80] sm:$0xff]
        %v619 = vld [vmem:[%s203 + $0xb88] sm:$0xff]
        %v620 = vld [vmem:[%s203 + $0xb90] sm:$0xff]
        %v621 = vld [vmem:[%s203 + $0xb98] sm:$0xff]
        %v622 = vld [vmem:[%s203 + $0xba0] sm:$0xff]
        %v623 = vld [vmem:[%s203 + $0xba8] sm:$0xff]
        %v624 = vld [vmem:[%s203 + $0xbb0] sm:$0xff]
        %v625 = vld [vmem:[%s203 + $0xbb8] sm:$0xff]
        %v626 = vld [vmem:[%s203 + $0xbc0] sm:$0xff]
        %v627 = vld [vmem:[%s203 + $0xbc8] sm:$0xff]
        %v628 = vld [vmem:[%s203 + $0xbd0] sm:$0xff]
        %v629 = vld [vmem:[%s203 + $0xbd8] sm:$0xff]
        %v630 = vld [vmem:[%s203 + $0xbe0] sm:$0xff]
        %v631 = vld [vmem:[%s203 + $0xbe8] sm:$0xff]
        %v632 = vld [vmem:[%s203 + $0xbf0] sm:$0xff]
        %v633 = vld [vmem:[%s203 + $0xbf8] sm:$0xff]
        %v634 = vld [vmem:[%s203 + $0xc00] sm:$0xff]
        %v635 = vld [vmem:[%s203 + $0xc08] sm:$0xff]
        %v636 = vld [vmem:[%s203 + $0xc10] sm:$0xff]
        %v637 = vld [vmem:[%s203 + $0xc18] sm:$0xff]
        %v638 = vld [vmem:[%s203 + $0xc20] sm:$0xff]
        %v639 = vld [vmem:[%s203 + $0xc28] sm:$0xff]
        %v640 = vld [vmem:[%s203 + $0xc30] sm:$0xff]
        %v641 = vld [vmem:[%s203 + $0xc38] sm:$0xff]
        %v642 = vld [vmem:[%s203 + $0xc40] sm:$0xff]
        %v643 = vld [vmem:[%s203 + $0xc48] sm:$0xff]
        %v644 = vld [vmem:[%s203 + $0xc50] sm:$0xff]
        %v645 = vld [vmem:[%s203 + $0xc58] sm:$0xff]
        %v646 = vld [vmem:[%s203 + $0xc60] sm:$0xff]
        %v647 = vld [vmem:[%s203 + $0xc68] sm:$0xff]
        %v648 = vld [vmem:[%s203 + $0xc70] sm:$0xff]
        %v649 = vld [vmem:[%s203 + $0xc78] sm:$0xff]
        %v650 = vld [vmem:[%s203 + $0xc80] sm:$0xff]
        %v651 = vld [vmem:[%s203 + $0xc88] sm:$0xff]
        %v652 = vld [vmem:[%s203 + $0xc90] sm:$0xff]
        %v653 = vld [vmem:[%s203 + $0xc98] sm:$0xff]
        %v654 = vld [vmem:[%s203 + $0xca0] sm:$0xff]
        %v655 = vld [vmem:[%s203 + $0xca8] sm:$0xff]
        %v656 = vld [vmem:[%s203 + $0xcb0] sm:$0xff]
        %v657 = vld [vmem:[%s203 + $0xcb8] sm:$0xff]
        %v658 = vld [vmem:[%s203 + $0xcc0] sm:$0xff]
        %v659 = vld [vmem:[%s203 + $0xcc8] sm:$0xff]
        %v660 = vld [vmem:[%s203 + $0xcd0] sm:$0xff]
        %v661 = vld [vmem:[%s203 + $0xcd8] sm:$0xff]
        %v662 = vld [vmem:[%s203 + $0xce0] sm:$0xff]
        %v663 = vld [vmem:[%s203 + $0xce8] sm:$0xff]
        %v664 = vld [vmem:[%s203 + $0xcf0] sm:$0xff]
        %v665 = vld [vmem:[%s203 + $0xcf8] sm:$0xff]
        %v666 = vld [vmem:[%s203 + $0xd00] sm:$0xff]
        %v667 = vld [vmem:[%s203 + $0xd08] sm:$0xff]
        %v668 = vld [vmem:[%s203 + $0xd10] sm:$0xff]
        %v669 = vld [vmem:[%s203 + $0xd18] sm:$0xff]
        %v670 = vld [vmem:[%s203 + $0xd20] sm:$0xff]
        %v671 = vld [vmem:[%s203 + $0xd28] sm:$0xff]
        %v672 = vld [vmem:[%s203 + $0xd30] sm:$0xff]
        %v673 = vld [vmem:[%s203 + $0xd38] sm:$0xff]
        %v674 = vld [vmem:[%s203 + $0xd40] sm:$0xff]
        %v675 = vld [vmem:[%s203 + $0xd48] sm:$0xff]
        %v676 = vld [vmem:[%s203 + $0xd50] sm:$0xff]
        %v677 = vld [vmem:[%s203 + $0xd58] sm:$0xff]
        %v678 = vld [vmem:[%s203 + $0xd60] sm:$0xff]
        %v679 = vld [vmem:[%s203 + $0xd68] sm:$0xff]
        %v680 = vld [vmem:[%s203 + $0xd70] sm:$0xff]
        %v681 = vld [vmem:[%s203 + $0xd78] sm:$0xff]
        %v682 = vld [vmem:[%s203 + $0xd80] sm:$0xff]
        %v683 = vld [vmem:[%s203 + $0xd88] sm:$0xff]
        %v684 = vld [vmem:[%s203 + $0xd90] sm:$0xff]
        %v685 = vld [vmem:[%s203 + $0xd98] sm:$0xff]
        %v686 = vld [vmem:[%s203 + $0xda0] sm:$0xff]
        %v687 = vld [vmem:[%s203 + $0xda8] sm:$0xff]
        %v688 = vld [vmem:[%s203 + $0xdb0] sm:$0xff]
        %v689 = vld [vmem:[%s203 + $0xdb8] sm:$0xff]
        %v690 = vld [vmem:[%s203 + $0xdc0] sm:$0xff]
        %v691 = vld [vmem:[%s203 + $0xdc8] sm:$0xff]
        %v692 = vld [vmem:[%s203 + $0xdd0] sm:$0xff]
        %v693 = vld [vmem:[%s203 + $0xdd8] sm:$0xff]
        %v694 = vld [vmem:[%s203 + $0xde0] sm:$0xff]
        %v695 = vld [vmem:[%s203 + $0xde8] sm:$0xff]
        %v696 = vld [vmem:[%s203 + $0xdf0] sm:$0xff]
        %v697 = vld [vmem:[%s203 + $0xdf8] sm:$0xff]
        %v698 = vld [vmem:[%s203 + $0xe00] sm:$0xff]
        %v699 = vld [vmem:[%s203 + $0xe08] sm:$0xff]
        %v700 = vld [vmem:[%s203 + $0xe10] sm:$0xff]
        %v701 = vld [vmem:[%s203 + $0xe18] sm:$0xff]
        %v702 = vld [vmem:[%s203 + $0xe20] sm:$0xff]
        %v703 = vld [vmem:[%s203 + $0xe28] sm:$0xff]
        %v704 = vld [vmem:[%s203 + $0xe30] sm:$0xff]
        %v705 = vld [vmem:[%s203 + $0xe38] sm:$0xff]
        %v706 = vld [vmem:[%s203 + $0xe40] sm:$0xff]
        %v707 = vld [vmem:[%s203 + $0xe48] sm:$0xff]
        %v708 = vld [vmem:[%s203 + $0xe50] sm:$0xff]
        %v709 = vld [vmem:[%s203 + $0xe58] sm:$0xff]
        %v710 = vld [vmem:[%s203 + $0xe60] sm:$0xff]
        %v711 = vld [vmem:[%s203 + $0xe68] sm:$0xff]
        %v712 = vld [vmem:[%s203 + $0xe70] sm:$0xff]
        %v713 = vld [vmem:[%s203 + $0xe78] sm:$0xff]
        %v714 = vld [vmem:[%s203 + $0xe80] sm:$0xff]
        %v715 = vld [vmem:[%s203 + $0xe88] sm:$0xff]
        %v716 = vld [vmem:[%s203 + $0xe90] sm:$0xff]
        %v717 = vld [vmem:[%s203 + $0xe98] sm:$0xff]
        %v718 = vld [vmem:[%s203 + $0xea0] sm:$0xff]
        %v719 = vld [vmem:[%s203 + $0xea8] sm:$0xff]
        %v720 = vld [vmem:[%s203 + $0xeb0] sm:$0xff]
        %v721 = vld [vmem:[%s203 + $0xeb8] sm:$0xff]
        %v722 = vld [vmem:[%s203 + $0xec0] sm:$0xff]
        %v723 = vld [vmem:[%s203 + $0xec8] sm:$0xff]
        %v724 = vld [vmem:[%s203 + $0xed0] sm:$0xff]
        %v725 = vld [vmem:[%s203 + $0xed8] sm:$0xff]
        %v726 = vld [vmem:[%s203 + $0xee0] sm:$0xff]
        %v727 = vld [vmem:[%s203 + $0xee8] sm:$0xff]
        %v728 = vld [vmem:[%s203 + $0xef0] sm:$0xff]
        %v729 = vld [vmem:[%s203 + $0xef8] sm:$0xff]
        %v730 = vld [vmem:[%s203 + $0xf00] sm:$0xff]
        %v731 = vld [vmem:[%s203 + $0xf08] sm:$0xff]
        %v732 = vld [vmem:[%s203 + $0xf10] sm:$0xff]
        %v733 = vld [vmem:[%s203 + $0xf18] sm:$0xff]
        %v734 = vld [vmem:[%s203 + $0xf20] sm:$0xff]
        %v735 = vld [vmem:[%s203 + $0xf28] sm:$0xff]
        %v736 = vld [vmem:[%s203 + $0xf30] sm:$0xff]
        %v737 = vld [vmem:[%s203 + $0xf38] sm:$0xff]
        %v738 = vld [vmem:[%s203 + $0xf40] sm:$0xff]
        %v739 = vld [vmem:[%s203 + $0xf48] sm:$0xff]
        %v740 = vld [vmem:[%s203 + $0xf50] sm:$0xff]
        %v741 = vld [vmem:[%s203 + $0xf58] sm:$0xff]
        %v742 = vld [vmem:[%s203 + $0xf60] sm:$0xff]
        %v743 = vld [vmem:[%s203 + $0xf68] sm:$0xff]
        %v744 = vld [vmem:[%s203 + $0xf70] sm:$0xff]
        %v745 = vld [vmem:[%s203 + $0xf78] sm:$0xff]
        %v746 = vld [vmem:[%s203 + $0xf80] sm:$0xff]
        %v747 = vld [vmem:[%s203 + $0xf88] sm:$0xff]
        %v748 = vld [vmem:[%s203 + $0xf90] sm:$0xff]
        %v749 = vld [vmem:[%s203 + $0xf98] sm:$0xff]
        %v750 = vld [vmem:[%s203 + $0xfa0] sm:$0xff]
        %v751 = vld [vmem:[%s203 + $0xfa8] sm:$0xff]
        %v752 = vld [vmem:[%s203 + $0xfb0] sm:$0xff]
        %v753 = vld [vmem:[%s203 + $0xfb8] sm:$0xff]
        %v754 = vld [vmem:[%s203 + $0xfc0] sm:$0xff]
        %v755 = vld [vmem:[%s203 + $0xfc8] sm:$0xff]
        %v756 = vld [vmem:[%s203 + $0xfd0] sm:$0xff]
        %v757 = vld [vmem:[%s203 + $0xfd8] sm:$0xff]
        %v758 = vld [vmem:[%s203 + $0xfe0] sm:$0xff]
        %v759 = vld [vmem:[%s203 + $0xfe8] sm:$0xff]
        %v760 = vld [vmem:[%s203 + $0xff0] sm:$0xff]
        %v761 = vld [vmem:[%s203 + $0xff8] sm:$0xff]
        %v762 = vld [vmem:[%s203 + $0x1000] sm:$0xff]
        %v763 = vld [vmem:[%s203 + $0x1008] sm:$0xff]
        %v764 = vld [vmem:[%s203 + $0x1010] sm:$0xff]
        %v765 = vld [vmem:[%s203 + $0x1018] sm:$0xff]
        %v766 = vld [vmem:[%s203 + $0x1020] sm:$0xff]
        %v767 = vld [vmem:[%s203 + $0x1028] sm:$0xff]
        %v768 = vld [vmem:[%s203 + $0x1030] sm:$0xff]
        %v769 = vld [vmem:[%s203 + $0x1038] sm:$0xff]
        %v770 = vld [vmem:[%s203 + $0x1040] sm:$0xff]
        %v771 = vld [vmem:[%s203 + $0x1048] sm:$0xff]
        %v772 = vld [vmem:[%s203 + $0x1050] sm:$0xff]
        %v773 = vld [vmem:[%s203 + $0x1058] sm:$0xff]
        %v774 = vld [vmem:[%s203 + $0x1060] sm:$0xff]
        %v775 = vld [vmem:[%s203 + $0x1068] sm:$0xff]
        %v776 = vld [vmem:[%s203 + $0x1070] sm:$0xff]
        %v777 = vld [vmem:[%s203 + $0x1078] sm:$0xff]
        %v778 = vld [vmem:[%s203 + $0x1080] sm:$0xff]
        %v779 = vld [vmem:[%s203 + $0x1088] sm:$0xff]
        %v780 = vld [vmem:[%s203 + $0x1090] sm:$0xff]
        %v781 = vld [vmem:[%s203 + $0x1098] sm:$0xff]
        %v782 = vld [vmem:[%s203 + $0x10a0] sm:$0xff]
        %v783 = vld [vmem:[%s203 + $0x10a8] sm:$0xff]
        %v784 = vld [vmem:[%s203 + $0x10b0] sm:$0xff]
        %v785 = vld [vmem:[%s203 + $0x10b8] sm:$0xff]
        %v786 = vld [vmem:[%s203 + $0x10c0] sm:$0xff]
        %v787 = vld [vmem:[%s203 + $0x10c8] sm:$0xff]
        %v788 = vld [vmem:[%s203 + $0x10d0] sm:$0xff]
        %v789 = vld [vmem:[%s203 + $0x10d8] sm:$0xff]
        %v790 = vld [vmem:[%s203 + $0x10e0] sm:$0xff]
        %v791 = vld [vmem:[%s203 + $0x10e8] sm:$0xff]
        %v792 = vld [vmem:[%s203 + $0x10f0] sm:$0xff]
        %v793 = vld [vmem:[%s203 + $0x10f8] sm:$0xff]
        %v794 = vld [vmem:[%s203 + $0x1100] sm:$0xff]
        %v795 = vld [vmem:[%s203 + $0x1108] sm:$0xff]
        %v796 = vld [vmem:[%s203 + $0x1110] sm:$0xff]
        %v797 = vld [vmem:[%s203 + $0x1118] sm:$0xff]
        %v798 = vld [vmem:[%s203 + $0x1120] sm:$0xff]
        %v799 = vld [vmem:[%s203 + $0x1128] sm:$0xff]
        %v800 = vld [vmem:[%s203 + $0x1130] sm:$0xff]
        %v801 = vld [vmem:[%s203 + $0x1138] sm:$0xff]
        %v802 = vld [vmem:[%s203 + $0x1140] sm:$0xff]
        %v803 = vld [vmem:[%s203 + $0x1148] sm:$0xff]
        %v804 = vld [vmem:[%s203 + $0x1150] sm:$0xff]
        %v805 = vld [vmem:[%s203 + $0x1158] sm:$0xff]
        %v806 = vld [vmem:[%s203 + $0x1160] sm:$0xff]
        %v807 = vld [vmem:[%s203 + $0x1168] sm:$0xff]
        %v808 = vld [vmem:[%s203 + $0x1170] sm:$0xff]
        %v809 = vld [vmem:[%s203 + $0x1178] sm:$0xff]
        %v810 = vld [vmem:[%s203 + $0x1180] sm:$0xff]
        %v811 = vld [vmem:[%s203 + $0x1188] sm:$0xff]
        %v812 = vld [vmem:[%s203 + $0x1190] sm:$0xff]
        %v813 = vld [vmem:[%s203 + $0x1198] sm:$0xff]
        %v814 = vld [vmem:[%s203 + $0x11a0] sm:$0xff]
        %v815 = vld [vmem:[%s203 + $0x11a8] sm:$0xff]
        %v816 = vld [vmem:[%s203 + $0x11b0] sm:$0xff]
        %v817 = vld [vmem:[%s203 + $0x11b8] sm:$0xff]
        %v818 = vld [vmem:[%s203 + $0x11c0] sm:$0xff]
        %v819 = vld [vmem:[%s203 + $0x11c8] sm:$0xff]
        %v820 = vld [vmem:[%s203 + $0x11d0] sm:$0xff]
        %v821 = vld [vmem:[%s203 + $0x11d8] sm:$0xff]
        %v822 = vld [vmem:[%s203 + $0x11e0] sm:$0xff]
        %v823 = vld [vmem:[%s203 + $0x11e8] sm:$0xff]
        %v824 = vld [vmem:[%s203 + $0x11f0] sm:$0xff]
        %v825 = vld [vmem:[%s203 + $0x11f8] sm:$0xff]
        %v826 = vld [vmem:[%s203 + $0x1200] sm:$0xff]
        %v827 = vld [vmem:[%s203 + $0x1208] sm:$0xff]
        %v828 = vld [vmem:[%s203 + $0x1210] sm:$0xff]
        %v829 = vld [vmem:[%s203 + $0x1218] sm:$0xff]
        %v830 = vld [vmem:[%s203 + $0x1220] sm:$0xff]
        %v831 = vld [vmem:[%s203 + $0x1228] sm:$0xff]
        %v832 = vld [vmem:[%s203 + $0x1230] sm:$0xff]
        %v833 = vld [vmem:[%s203 + $0x1238] sm:$0xff]
        %v834 = vld [vmem:[%s203 + $0x1240] sm:$0xff]
        %v835 = vld [vmem:[%s203 + $0x1248] sm:$0xff]
        %v836 = vld [vmem:[%s203 + $0x1250] sm:$0xff]
        %v837 = vld [vmem:[%s203 + $0x1258] sm:$0xff]
        %v838 = vld [vmem:[%s203 + $0x1260] sm:$0xff]
        %v839 = vld [vmem:[%s203 + $0x1268] sm:$0xff]
        %v840 = vld [vmem:[%s203 + $0x1270] sm:$0xff]
        %v841 = vld [vmem:[%s203 + $0x1278] sm:$0xff]
        %v842 = vld [vmem:[%s203 + $0x1280] sm:$0xff]
        %v843 = vld [vmem:[%s203 + $0x1288] sm:$0xff]
        %v844 = vld [vmem:[%s203 + $0x1290] sm:$0xff]
        %v845 = vld [vmem:[%s203 + $0x1298] sm:$0xff]
        %v846 = vld [vmem:[%s203 + $0x12a0] sm:$0xff]
        %v847 = vld [vmem:[%s203 + $0x12a8] sm:$0xff]
        %v848 = vld [vmem:[%s203 + $0x12b0] sm:$0xff]
        %v849 = vld [vmem:[%s203 + $0x12b8] sm:$0xff]
        %v850 = vld [vmem:[%s203 + $0x12c0] sm:$0xff]
        %v851 = vld [vmem:[%s203 + $0x12c8] sm:$0xff]
        %v852 = vld [vmem:[%s203 + $0x12d0] sm:$0xff]
        %v853 = vld [vmem:[%s203 + $0x12d8] sm:$0xff]
        %v854 = vld [vmem:[%s203 + $0x12e0] sm:$0xff]
        %v855 = vld [vmem:[%s203 + $0x12e8] sm:$0xff]
        %v856 = vld [vmem:[%s203 + $0x12f0] sm:$0xff]
        %v857 = vld [vmem:[%s203 + $0x12f8] sm:$0xff]
        %v858 = vld [vmem:[%s203 + $0x1300] sm:$0xff]
        %v859 = vld [vmem:[%s203 + $0x1308] sm:$0xff]
        %v860 = vld [vmem:[%s203 + $0x1310] sm:$0xff]
        %v861 = vld [vmem:[%s203 + $0x1318] sm:$0xff]
        %v862 = vld [vmem:[%s203 + $0x1320] sm:$0xff]
        %v863 = vld [vmem:[%s203 + $0x1328] sm:$0xff]
        %v864 = vld [vmem:[%s203 + $0x1330] sm:$0xff]
        %v865 = vld [vmem:[%s203 + $0x1338] sm:$0xff]
        %v866 = vld [vmem:[%s203 + $0x1340] sm:$0xff]
        %v867 = vld [vmem:[%s203 + $0x1348] sm:$0xff]
        %v868 = vld [vmem:[%s203 + $0x1350] sm:$0xff]
        %v869 = vld [vmem:[%s203 + $0x1358] sm:$0xff]
        %v870 = vld [vmem:[%s203 + $0x1360] sm:$0xff]
        %v871 = vld [vmem:[%s203 + $0x1368] sm:$0xff]
        %v872 = vld [vmem:[%s203 + $0x1370] sm:$0xff]
        %v873 = vld [vmem:[%s203 + $0x1378] sm:$0xff]
        %v874 = vld [vmem:[%s203 + $0x1380] sm:$0xff]
        %v875 = vld [vmem:[%s203 + $0x1388] sm:$0xff]
        %v876 = vld [vmem:[%s203 + $0x1390] sm:$0xff]
        %v877 = vld [vmem:[%s203 + $0x1398] sm:$0xff]
        %v878 = vld [vmem:[%s203 + $0x13a0] sm:$0xff]
        %v879 = vld [vmem:[%s203 + $0x13a8] sm:$0xff]
        %v880 = vld [vmem:[%s203 + $0x13b0] sm:$0xff]
        %v881 = vld [vmem:[%s203 + $0x13b8] sm:$0xff]
        %v882 = vld [vmem:[%s203 + $0x13c0] sm:$0xff]
        %v883 = vld [vmem:[%s203 + $0x13c8] sm:$0xff]
        %v884 = vld [vmem:[%s203 + $0x13d0] sm:$0xff]
        %v885 = vld [vmem:[%s203 + $0x13d8] sm:$0xff]
        %v886 = vld [vmem:[%s203 + $0x13e0] sm:$0xff]
        %v887 = vld [vmem:[%s203 + $0x13e8] sm:$0xff]
        %v888 = vld [vmem:[%s203 + $0x13f0] sm:$0xff]
        %v889 = vld [vmem:[%s203 + $0x13f8] sm:$0xff]
        %v890 = vld [vmem:[%s203 + $0x1400] sm:$0xff]
        %v891 = vld [vmem:[%s203 + $0x1408] sm:$0xff]
        %v892 = vld [vmem:[%s203 + $0x1410] sm:$0xff]
        %v893 = vld [vmem:[%s203 + $0x1418] sm:$0xff]
        %v894 = vld [vmem:[%s203 + $0x1420] sm:$0xff]
        %v895 = vld [vmem:[%s203 + $0x1428] sm:$0xff]
        %v896 = vld [vmem:[%s203 + $0x1430] sm:$0xff]
        %v897 = vld [vmem:[%s203 + $0x1438] sm:$0xff]
        %v898 = vld [vmem:[%s203 + $0x1440] sm:$0xff]
        %v899 = vld [vmem:[%s203 + $0x1448] sm:$0xff]
        %v900 = vld [vmem:[%s203 + $0x1450] sm:$0xff]
        %v901 = vld [vmem:[%s203 + $0x1458] sm:$0xff]
        %v902 = vld [vmem:[%s203 + $0x1460] sm:$0xff]
        %v903 = vld [vmem:[%s203 + $0x1468] sm:$0xff]
        %v904 = vld [vmem:[%s203 + $0x1470] sm:$0xff]
        %v905 = vld [vmem:[%s203 + $0x1478] sm:$0xff]
        %v906 = vld [vmem:[%s203 + $0x1480] sm:$0xff]
        %v907 = vld [vmem:[%s203 + $0x1488] sm:$0xff]
        %v908 = vld [vmem:[%s203 + $0x1490] sm:$0xff]
        %v909 = vld [vmem:[%s203 + $0x1498] sm:$0xff]
        %v910 = vld [vmem:[%s203 + $0x14a0] sm:$0xff]
        %v911 = vld [vmem:[%s203 + $0x14a8] sm:$0xff]
        %v912 = vld [vmem:[%s203 + $0x14b0] sm:$0xff]
        %v913 = vld [vmem:[%s203 + $0x14b8] sm:$0xff]
        %v914 = vld [vmem:[%s203 + $0x14c0] sm:$0xff]
        %v915 = vld [vmem:[%s203 + $0x14c8] sm:$0xff]
        %v916 = vld [vmem:[%s203 + $0x14d0] sm:$0xff]
        %v917 = vld [vmem:[%s203 + $0x14d8] sm:$0xff]
        %v918 = vld [vmem:[%s203 + $0x14e0] sm:$0xff]
        %v919 = vld [vmem:[%s203 + $0x14e8] sm:$0xff]
        %v920 = vld [vmem:[%s203 + $0x14f0] sm:$0xff]
        %v921 = vld [vmem:[%s203 + $0x14f8] sm:$0xff]
        %v922 = vld [vmem:[%s203 + $0x1500] sm:$0xff]
        %v923 = vld [vmem:[%s203 + $0x1508] sm:$0xff]
        %v924 = vld [vmem:[%s203 + $0x1510] sm:$0xff]
        %v925 = vld [vmem:[%s203 + $0x1518] sm:$0xff]
        %v926 = vld [vmem:[%s203 + $0x1520] sm:$0xff]
        %v927 = vld [vmem:[%s203 + $0x1528] sm:$0xff]
        %v928 = vld [vmem:[%s203 + $0x1530] sm:$0xff]
        %v929 = vld [vmem:[%s203 + $0x1538] sm:$0xff]
        %v930 = vld [vmem:[%s203 + $0x1540] sm:$0xff]
        %v931 = vld [vmem:[%s203 + $0x1548] sm:$0xff]
        %v932 = vld [vmem:[%s203 + $0x1550] sm:$0xff]
        %v933 = vld [vmem:[%s203 + $0x1558] sm:$0xff]
        %v934 = vld [vmem:[%s203 + $0x1560] sm:$0xff]
        %v935 = vld [vmem:[%s203 + $0x1568] sm:$0xff]
        %v936 = vld [vmem:[%s203 + $0x1570] sm:$0xff]
        %v937 = vld [vmem:[%s203 + $0x1578] sm:$0xff]
        %v938 = vld [vmem:[%s203 + $0x1580] sm:$0xff]
        %v939 = vld [vmem:[%s203 + $0x1588] sm:$0xff]
        %v940 = vld [vmem:[%s203 + $0x1590] sm:$0xff]
        %v941 = vld [vmem:[%s203 + $0x1598] sm:$0xff]
        %v942 = vld [vmem:[%s203 + $0x15a0] sm:$0xff]
        %v943 = vld [vmem:[%s203 + $0x15a8] sm:$0xff]
        %v944 = vld [vmem:[%s203 + $0x15b0] sm:$0xff]
        %v945 = vld [vmem:[%s203 + $0x15b8] sm:$0xff]
        %v946 = vld [vmem:[%s203 + $0x15c0] sm:$0xff]
        %v947 = vld [vmem:[%s203 + $0x15c8] sm:$0xff]
        %v948 = vld [vmem:[%s203 + $0x15d0] sm:$0xff]
        %v949 = vld [vmem:[%s203 + $0x15d8] sm:$0xff]
        %v950 = vld [vmem:[%s203 + $0x15e0] sm:$0xff]
        %v951 = vld [vmem:[%s203 + $0x15e8] sm:$0xff]
        %v952 = vld [vmem:[%s203 + $0x15f0] sm:$0xff]
        %v953 = vld [vmem:[%s203 + $0x15f8] sm:$0xff]
        %v954 = vld [vmem:[%s203 + $0x1600] sm:$0xff]
        %v955 = vld [vmem:[%s203 + $0x1608] sm:$0xff]
        %v956 = vld [vmem:[%s203 + $0x1610] sm:$0xff]
        %v957 = vld [vmem:[%s203 + $0x1618] sm:$0xff]
        %v958 = vld [vmem:[%s203 + $0x1620] sm:$0xff]
        %v959 = vld [vmem:[%s203 + $0x1628] sm:$0xff]
        %v960 = vld [vmem:[%s203 + $0x1630] sm:$0xff]
        %v961 = vld [vmem:[%s203 + $0x1638] sm:$0xff]
        %v962 = vld [vmem:[%s203 + $0x1640] sm:$0xff]
        %v963 = vld [vmem:[%s203 + $0x1648] sm:$0xff]
        %v964 = vld [vmem:[%s203 + $0x1650] sm:$0xff]
        %v965 = vld [vmem:[%s203 + $0x1658] sm:$0xff]
        %v966 = vld [vmem:[%s203 + $0x1660] sm:$0xff]
        %v967 = vld [vmem:[%s203 + $0x1668] sm:$0xff]
        %v968 = vld [vmem:[%s203 + $0x1670] sm:$0xff]
        %v969 = vld [vmem:[%s203 + $0x1678] sm:$0xff]
        %v970 = vld [vmem:[%s203 + $0x1680] sm:$0xff]
        %v971 = vld [vmem:[%s203 + $0x1688] sm:$0xff]
        %v972 = vld [vmem:[%s203 + $0x1690] sm:$0xff]
        %v973 = vld [vmem:[%s203 + $0x1698] sm:$0xff]
        %v974 = vld [vmem:[%s203 + $0x16a0] sm:$0xff]
        %v975 = vld [vmem:[%s203 + $0x16a8] sm:$0xff]
        %v976 = vld [vmem:[%s203 + $0x16b0] sm:$0xff]
        %v977 = vld [vmem:[%s203 + $0x16b8] sm:$0xff]
        %v978 = vld [vmem:[%s203 + $0x16c0] sm:$0xff]
        %v979 = vld [vmem:[%s203 + $0x16c8] sm:$0xff]
        %v980 = vld [vmem:[%s203 + $0x16d0] sm:$0xff]
        %v981 = vld [vmem:[%s203 + $0x16d8] sm:$0xff]
        %v982 = vld [vmem:[%s203 + $0x16e0] sm:$0xff]
        %v983 = vld [vmem:[%s203 + $0x16e8] sm:$0xff]
        %v984 = vld [vmem:[%s203 + $0x16f0] sm:$0xff]
        %v985 = vld [vmem:[%s203 + $0x16f8] sm:$0xff]
        %v986 = vld [vmem:[%s203 + $0x1700] sm:$0xff]
        %v987 = vld [vmem:[%s203 + $0x1708] sm:$0xff]
        %v988 = vld [vmem:[%s203 + $0x1710] sm:$0xff]
        %v989 = vld [vmem:[%s203 + $0x1718] sm:$0xff]
        %v990 = vld [vmem:[%s203 + $0x1720] sm:$0xff]
        %v991 = vld [vmem:[%s203 + $0x1728] sm:$0xff]
        %v992 = vld [vmem:[%s203 + $0x1730] sm:$0xff]
        %v993 = vld [vmem:[%s203 + $0x1738] sm:$0xff]
        %v994 = vld [vmem:[%s203 + $0x1740] sm:$0xff]
        %v995 = vld [vmem:[%s203 + $0x1748] sm:$0xff]
        %v996 = vld [vmem:[%s203 + $0x1750] sm:$0xff]
        %v997 = vld [vmem:[%s203 + $0x1758] sm:$0xff]
        %v998 = vld [vmem:[%s203 + $0x1760] sm:$0xff]
        %v999 = vld [vmem:[%s203 + $0x1768] sm:$0xff]
        %v1000 = vld [vmem:[%s203 + $0x1770] sm:$0xff]
        %v1001 = vld [vmem:[%s203 + $0x1778] sm:$0xff]
        %v1002 = vld [vmem:[%s203 + $0x1780] sm:$0xff]
        %v1003 = vld [vmem:[%s203 + $0x1788] sm:$0xff]
        %v1004 = vld [vmem:[%s203 + $0x1790] sm:$0xff]
        %v1005 = vld [vmem:[%s203 + $0x1798] sm:$0xff]
        %v1006 = vld [vmem:[%s203 + $0x17a0] sm:$0xff]
        %v1007 = vld [vmem:[%s203 + $0x17a8] sm:$0xff]
        %v1008 = vld [vmem:[%s203 + $0x17b0] sm:$0xff]
        %v1009 = vld [vmem:[%s203 + $0x17b8] sm:$0xff]
        %v1010 = vld [vmem:[%s203 + $0x17c0] sm:$0xff]
        %v1011 = vld [vmem:[%s203 + $0x17c8] sm:$0xff]
        %v1012 = vld [vmem:[%s203 + $0x17d0] sm:$0xff]
        %v1013 = vld [vmem:[%s203 + $0x17d8] sm:$0xff]
        %v1014 = vld [vmem:[%s203 + $0x17e0] sm:$0xff]
        %v1015 = vld [vmem:[%s203 + $0x17e8] sm:$0xff]
        %v1016 = vld [vmem:[%s203 + $0x17f0] sm:$0xff]
        %v1017 = vld [vmem:[%s203 + $0x17f8] sm:$0xff]
        %v1018 = vld [vmem:[%s203 + $0x1800] sm:$0xff]
        %v1019 = vld [vmem:[%s203 + $0x1808] sm:$0xff]
        %v1020 = vld [vmem:[%s203 + $0x1810] sm:$0xff]
        %v1021 = vld [vmem:[%s203 + $0x1818] sm:$0xff]
        %v1022 = vld [vmem:[%s203 + $0x1820] sm:$0xff]
        %v1023 = vld [vmem:[%s203 + $0x1828] sm:$0xff]
        %v1024 = vld [vmem:[%s203 + $0x1830] sm:$0xff]
        %v1025 = vld [vmem:[%s203 + $0x1838] sm:$0xff]
        %v1026 = vld [vmem:[%s203 + $0x1840] sm:$0xff]
        %v1027 = vld [vmem:[%s203 + $0x1848] sm:$0xff]
        %v1028 = vld [vmem:[%s203 + $0x1850] sm:$0xff]
        %v1029 = vld [vmem:[%s203 + $0x1858] sm:$0xff]
        %v1030 = vld [vmem:[%s203 + $0x1860] sm:$0xff]
        %v1031 = vld [vmem:[%s203 + $0x1868] sm:$0xff]
        %v1032 = vld [vmem:[%s203 + $0x1870] sm:$0xff]
        %v1033 = vld [vmem:[%s203 + $0x1878] sm:$0xff]
        %v1034 = vld [vmem:[%s203 + $0x1880] sm:$0xff]
        %v1035 = vld [vmem:[%s203 + $0x1888] sm:$0xff]
        %v1036 = vld [vmem:[%s203 + $0x1890] sm:$0xff]
        %v1037 = vld [vmem:[%s203 + $0x1898] sm:$0xff]
        %v1038 = vld [vmem:[%s203 + $0x18a0] sm:$0xff]
        %v1039 = vld [vmem:[%s203 + $0x18a8] sm:$0xff]
        %v1040 = vld [vmem:[%s203 + $0x18b0] sm:$0xff]
        %v1041 = vld [vmem:[%s203 + $0x18b8] sm:$0xff]
        %v1042 = vld [vmem:[%s203 + $0x18c0] sm:$0xff]
        %v1043 = vld [vmem:[%s203 + $0x18c8] sm:$0xff]
        %v1044 = vld [vmem:[%s203 + $0x18d0] sm:$0xff]
        %v1045 = vld [vmem:[%s203 + $0x18d8] sm:$0xff]
        %v1046 = vld [vmem:[%s203 + $0x18e0] sm:$0xff]
        %v1047 = vld [vmem:[%s203 + $0x18e8] sm:$0xff]
        %v1048 = vld [vmem:[%s203 + $0x18f0] sm:$0xff]
        %v1049 = vld [vmem:[%s203 + $0x18f8] sm:$0xff]
        %v1050 = vld [vmem:[%s203 + $0x1900] sm:$0xff]
        %v1051 = vld [vmem:[%s203 + $0x1908] sm:$0xff]
        %v1052 = vld [vmem:[%s203 + $0x1910] sm:$0xff]
        %v1053 = vld [vmem:[%s203 + $0x1918] sm:$0xff]
        %v1054 = vld [vmem:[%s203 + $0x1920] sm:$0xff]
        %v1055 = vld [vmem:[%s203 + $0x1928] sm:$0xff]
        %v1056 = vld [vmem:[%s203 + $0x1930] sm:$0xff]
        %v1057 = vld [vmem:[%s203 + $0x1938] sm:$0xff]
        %v1058 = vld [vmem:[%s203 + $0x1940] sm:$0xff]
        %v1059 = vld [vmem:[%s203 + $0x1948] sm:$0xff]
        %v1060 = vld [vmem:[%s203 + $0x1950] sm:$0xff]
        %v1061 = vld [vmem:[%s203 + $0x1958] sm:$0xff]
        %v1062 = vld [vmem:[%s203 + $0x1960] sm:$0xff]
        %v1063 = vld [vmem:[%s203 + $0x1968] sm:$0xff]
        %v1064 = vld [vmem:[%s203 + $0x1970] sm:$0xff]
        %v1065 = vld [vmem:[%s203 + $0x1978] sm:$0xff]
        %v1066 = vld [vmem:[%s203 + $0x1980] sm:$0xff]
        %v1067 = vld [vmem:[%s203 + $0x1988] sm:$0xff]
        %v1068 = vld [vmem:[%s203 + $0x1990] sm:$0xff]
        %v1069 = vld [vmem:[%s203 + $0x1998] sm:$0xff]
        %v1070 = vld [vmem:[%s203 + $0x19a0] sm:$0xff]
        %v1071 = vld [vmem:[%s203 + $0x19a8] sm:$0xff]
        %v1072 = vld [vmem:[%s203 + $0x19b0] sm:$0xff]
        %v1073 = vld [vmem:[%s203 + $0x19b8] sm:$0xff]
        %v1074 = vld [vmem:[%s203 + $0x19c0] sm:$0xff]
        %v1075 = vld [vmem:[%s203 + $0x19c8] sm:$0xff]
        %v1076 = vld [vmem:[%s203 + $0x19d0] sm:$0xff]
        %v1077 = vld [vmem:[%s203 + $0x19d8] sm:$0xff]
        %v1078 = vld [vmem:[%s203 + $0x19e0] sm:$0xff]
        %v1079 = vld [vmem:[%s203 + $0x19e8] sm:$0xff]
        %v1080 = vld [vmem:[%s203 + $0x19f0] sm:$0xff]
        %v1081 = vld [vmem:[%s203 + $0x19f8] sm:$0xff]
        %v1082 = vld [vmem:[%s203 + $0x1a00] sm:$0xff]
        %v1083 = vld [vmem:[%s203 + $0x1a08] sm:$0xff]
        %v1084 = vld [vmem:[%s203 + $0x1a10] sm:$0xff]
        %v1085 = vld [vmem:[%s203 + $0x1a18] sm:$0xff]
        %v1086 = vld [vmem:[%s203 + $0x1a20] sm:$0xff]
        %v1087 = vld [vmem:[%s203 + $0x1a28] sm:$0xff]
        %v1088 = vld [vmem:[%s203 + $0x1a30] sm:$0xff]
        %v1089 = vld [vmem:[%s203 + $0x1a38] sm:$0xff]
        %v1090 = vld [vmem:[%s203 + $0x1a40] sm:$0xff]
        %v1091 = vld [vmem:[%s203 + $0x1a48] sm:$0xff]
        %v1092 = vld [vmem:[%s203 + $0x1a50] sm:$0xff]
        %v1093 = vld [vmem:[%s203 + $0x1a58] sm:$0xff]
        %v1094 = vld [vmem:[%s203 + $0x1a60] sm:$0xff]
        %v1095 = vld [vmem:[%s203 + $0x1a68] sm:$0xff]
        %v1096 = vld [vmem:[%s203 + $0x1a70] sm:$0xff]
        %v1097 = vld [vmem:[%s203 + $0x1a78] sm:$0xff]
        %v1098 = vld [vmem:[%s203 + $0x1a80] sm:$0xff]
        %v1099 = vld [vmem:[%s203 + $0x1a88] sm:$0xff]
        %v1100 = vld [vmem:[%s203 + $0x1a90] sm:$0xff]
        %v1101 = vld [vmem:[%s203 + $0x1a98] sm:$0xff]
        %v1102 = vld [vmem:[%s203 + $0x1aa0] sm:$0xff]
        %v1103 = vld [vmem:[%s203 + $0x1aa8] sm:$0xff]
        %v1104 = vld [vmem:[%s203 + $0x1ab0] sm:$0xff]
        %v1105 = vld [vmem:[%s203 + $0x1ab8] sm:$0xff]
        %v1106 = vld [vmem:[%s203 + $0x1ac0] sm:$0xff]
        %v1107 = vld [vmem:[%s203 + $0x1ac8] sm:$0xff]
        %v1108 = vld [vmem:[%s203 + $0x1ad0] sm:$0xff]
        %v1109 = vld [vmem:[%s203 + $0x1ad8] sm:$0xff]
        %v1110 = vld [vmem:[%s203 + $0x1ae0] sm:$0xff]
        %v1111 = vld [vmem:[%s203 + $0x1ae8] sm:$0xff]
        %v1112 = vld [vmem:[%s203 + $0x1af0] sm:$0xff]
        %v1113 = vld [vmem:[%s203 + $0x1af8] sm:$0xff]
        %v1114 = vld [vmem:[%s213] sm:$0x7]
        %v1116 = vperm.slane %v1114, 0
        %v1117 = vperm.slane %v1114, 1
        %v1118 = vperm.slane %v1114, 2
        %1127 = vst [vmem:[#allocation1] ss:$4 sm:$0xff] %v245
        %s1128 = scalar_lea.vmem [#allocation1], 32
        %1129 = vst [vmem:[%s1128] ss:$4 sm:$0xff] %v246
        %v1130 = vld.sshfl [vmem:[#allocation1] sm:$0xff pattern:$0x73625140]
        %v1131 = vld.sshfl [vmem:[#allocation1 + $0x8] sm:$0xff pattern:$0x73625140]
        %v1132 = vld.sshfl [vmem:[#allocation1 + $0x10] sm:$0xff pattern:$0x73625140]
        %v1133 = vld.sshfl [vmem:[#allocation1 + $0x18] sm:$0xff pattern:$0x73625140]
        %v1134 = vld.sshfl [vmem:[#allocation1 + $0x20] sm:$0xff pattern:$0x73625140]
        %v1135 = vld.sshfl [vmem:[#allocation1 + $0x28] sm:$0xff pattern:$0x73625140]
        %v1136 = vld.sshfl [vmem:[#allocation1 + $0x30] sm:$0xff pattern:$0x73625140]
        %v1137 = vld.sshfl [vmem:[#allocation1 + $0x38] sm:$0xff pattern:$0x73625140]
        %1138 = vst [vmem:[#allocation1] ss:$4 sm:$0xff] %v247
        %1139 = vst [vmem:[%s1128] ss:$4 sm:$0xff] %v248
        %v1140 = vld.sshfl [vmem:[#allocation1] sm:$0xff pattern:$0x73625140]
        %v1141 = vld.sshfl [vmem:[#allocation1 + $0x8] sm:$0xff pattern:$0x73625140]
        %v1142 = vld.sshfl [vmem:[#allocation1 + $0x10] sm:$0xff pattern:$0x73625140]
        %v1143 = vld.sshfl [vmem:[#allocation1 + $0x18] sm:$0xff pattern:$0x73625140]
        %v1144 = vld.sshfl [vmem:[#allocation1 + $0x20] sm:$0xff pattern:$0x73625140]
        %v1145 = vld.sshfl [vmem:[#allocation1 + $0x28] sm:$0xff pattern:$0x73625140]
        %v1146 = vld.sshfl [vmem:[#allocation1 + $0x30] sm:$0xff pattern:$0x73625140]
        %v1147 = vld.sshfl [vmem:[#allocation1 + $0x38] sm:$0xff pattern:$0x73625140]
        %1148 = vst [vmem:[#allocation1] ss:$4 sm:$0xff] %v249
        %v1149 = vld.sshfl [vmem:[#allocation1] sm:$0xff pattern:$0x73625140]
        %v1150 = vld.sshfl [vmem:[#allocation1 + $0x8] sm:$0xff pattern:$0x73625140]
        %1169 = vmatpush.msra.mxu0 %v295
        %1170 = vmatpush.msra.mxu0 %v292
        %1171 = vmatpush.msra.mxu0 %v289
        %1172 = vmatpush.msra.mxu0 %v286
        %1173 = vmatpush.msra.mxu0 %v283
        %1174 = vmatpush.msra.mxu0 %v280
        %1175 = vmatpush.msra.mxu0 %v277
        %1176 = vmatpush.msra.mxu0 %v274
        %1177 = vmatpush.msra.mxu0 %v271
        %1178 = vmatpush.msra.mxu0 %v268
        %1179 = vmatpush.msra.mxu0 %v265
        %1180 = vmatpush.msra.mxu0 %v262
        %1181 = vmatpush.msra.mxu0 %v259
        %1182 = vmatpush.msra.mxu0 %v256
        %1183 = vmatpush.msra.mxu0 %v253
        %1184 = vmatpush.msra.mxu0 %v250
        %1185 = vmatmul.f32.gmra.mxu0 %v1130
        %v1186 = vpop.f32.mrf.mxu0
        %v1187 = vadd.f32 %v1116, %v1186
        %1188 = vdwg.mxu0
        %1189 = vmatpush.msra.mxu0 %v343
        %1190 = vmatpush.msra.mxu0 %v340
        %1191 = vmatpush.msra.mxu0 %v337
        %1192 = vmatpush.msra.mxu0 %v334
        %1193 = vmatpush.msra.mxu0 %v331
        %1194 = vmatpush.msra.mxu0 %v328
        %1195 = vmatpush.msra.mxu0 %v325
        %1196 = vmatpush.msra.mxu0 %v322
        %1197 = vmatpush.msra.mxu0 %v319
        %1198 = vmatpush.msra.mxu0 %v316
        %1199 = vmatpush.msra.mxu0 %v313
        %1200 = vmatpush.msra.mxu0 %v310
        %1201 = vmatpush.msra.mxu0 %v307
        %1202 = vmatpush.msra.mxu0 %v304
        %1203 = vmatpush.msra.mxu0 %v301
        %1204 = vmatpush.msra.mxu0 %v298
        %1205 = vmatmul.f32.gmra.mxu0 %v1131
        %v1206 = vpop.f32.mrf.mxu0
        %v1207 = vadd.f32 %v1187, %v1206
        %1208 = vdwg.mxu0
        %1209 = vmatpush.msra.mxu0 %v391
        %1210 = vmatpush.msra.mxu0 %v388
        %1211 = vmatpush.msra.mxu0 %v385
        %1212 = vmatpush.msra.mxu0 %v382
        %1213 = vmatpush.msra.mxu0 %v379
        %1214 = vmatpush.msra.mxu0 %v376
        %1215 = vmatpush.msra.mxu0 %v373
        %1216 = vmatpush.msra.mxu0 %v370
        %1217 = vmatpush.msra.mxu0 %v367
        %1218 = vmatpush.msra.mxu0 %v364
        %1219 = vmatpush.msra.mxu0 %v361
        %1220 = vmatpush.msra.mxu0 %v358
        %1221 = vmatpush.msra.mxu0 %v355
        %1222 = vmatpush.msra.mxu0 %v352
        %1223 = vmatpush.msra.mxu0 %v349
        %1224 = vmatpush.msra.mxu0 %v346
        %1225 = vmatmul.f32.gmra.mxu0 %v1132
        %v1226 = vpop.f32.mrf.mxu0
        %v1227 = vadd.f32 %v1207, %v1226
        %1228 = vdwg.mxu0
        %1229 = vmatpush.msra.mxu0 %v439
        %1230 = vmatpush.msra.mxu0 %v436
        %1231 = vmatpush.msra.mxu0 %v433
        %1232 = vmatpush.msra.mxu0 %v430
        %1233 = vmatpush.msra.mxu0 %v427
        %1234 = vmatpush.msra.mxu0 %v424
        %1235 = vmatpush.msra.mxu0 %v421
        %1236 = vmatpush.msra.mxu0 %v418
        %1237 = vmatpush.msra.mxu0 %v415
        %1238 = vmatpush.msra.mxu0 %v412
        %1239 = vmatpush.msra.mxu0 %v409
        %1240 = vmatpush.msra.mxu0 %v406
        %1241 = vmatpush.msra.mxu0 %v403
        %1242 = vmatpush.msra.mxu0 %v400
        %1243 = vmatpush.msra.mxu0 %v397
        %1244 = vmatpush.msra.mxu0 %v394
        %1245 = vmatmul.f32.gmra.mxu0 %v1133
        %v1246 = vpop.f32.mrf.mxu0
        %v1247 = vadd.f32 %v1227, %v1246
        %1248 = vdwg.mxu0
        %1249 = vmatpush.msra.mxu0 %v487
        %1250 = vmatpush.msra.mxu0 %v484
        %1251 = vmatpush.msra.mxu0 %v481
        %1252 = vmatpush.msra.mxu0 %v478
        %1253 = vmatpush.msra.mxu0 %v475
        %1254 = vmatpush.msra.mxu0 %v472
        %1255 = vmatpush.msra.mxu0 %v469
        %1256 = vmatpush.msra.mxu0 %v466
        %1257 = vmatpush.msra.mxu0 %v463
        %1258 = vmatpush.msra.mxu0 %v460
        %1259 = vmatpush.msra.mxu0 %v457
        %1260 = vmatpush.msra.mxu0 %v454
        %1261 = vmatpush.msra.mxu0 %v451
        %1262 = vmatpush.msra.mxu0 %v448
        %1263 = vmatpush.msra.mxu0 %v445
        %1264 = vmatpush.msra.mxu0 %v442
        %1265 = vmatmul.f32.gmra.mxu0 %v1134
        %v1266 = vpop.f32.mrf.mxu0
        %v1267 = vadd.f32 %v1247, %v1266
        %1268 = vdwg.mxu0
        %1269 = vmatpush.msra.mxu0 %v535
        %1270 = vmatpush.msra.mxu0 %v532
        %1271 = vmatpush.msra.mxu0 %v529
        %1272 = vmatpush.msra.mxu0 %v526
        %1273 = vmatpush.msra.mxu0 %v523
        %1274 = vmatpush.msra.mxu0 %v520
        %1275 = vmatpush.msra.mxu0 %v517
        %1276 = vmatpush.msra.mxu0 %v514
        %1277 = vmatpush.msra.mxu0 %v511
        %1278 = vmatpush.msra.mxu0 %v508
        %1279 = vmatpush.msra.mxu0 %v505
        %1280 = vmatpush.msra.mxu0 %v502
        %1281 = vmatpush.msra.mxu0 %v499
        %1282 = vmatpush.msra.mxu0 %v496
        %1283 = vmatpush.msra.mxu0 %v493
        %1284 = vmatpush.msra.mxu0 %v490
        %1285 = vmatmul.f32.gmra.mxu0 %v1135
        %v1286 = vpop.f32.mrf.mxu0
        %v1287 = vadd.f32 %v1267, %v1286
        %1288 = vdwg.mxu0
        %1289 = vmatpush.msra.mxu0 %v583
        %1290 = vmatpush.msra.mxu0 %v580
        %1291 = vmatpush.msra.mxu0 %v577
        %1292 = vmatpush.msra.mxu0 %v574
        %1293 = vmatpush.msra.mxu0 %v571
        %1294 = vmatpush.msra.mxu0 %v568
        %1295 = vmatpush.msra.mxu0 %v565
        %1296 = vmatpush.msra.mxu0 %v562
        %1297 = vmatpush.msra.mxu0 %v559
        %1298 = vmatpush.msra.mxu0 %v556
        %1299 = vmatpush.msra.mxu0 %v553
        %1300 = vmatpush.msra.mxu0 %v550
        %1301 = vmatpush.msra.mxu0 %v547
        %1302 = vmatpush.msra.mxu0 %v544
        %1303 = vmatpush.msra.mxu0 %v541
        %1304 = vmatpush.msra.mxu0 %v538
        %1305 = vmatmul.f32.gmra.mxu0 %v1136
        %v1306 = vpop.f32.mrf.mxu0
        %v1307 = vadd.f32 %v1287, %v1306
        %1308 = vdwg.mxu0
        %1309 = vmatpush.msra.mxu0 %v631
        %1310 = vmatpush.msra.mxu0 %v628
        %1311 = vmatpush.msra.mxu0 %v625
        %1312 = vmatpush.msra.mxu0 %v622
        %1313 = vmatpush.msra.mxu0 %v619
        %1314 = vmatpush.msra.mxu0 %v616
        %1315 = vmatpush.msra.mxu0 %v613
        %1316 = vmatpush.msra.mxu0 %v610
        %1317 = vmatpush.msra.mxu0 %v607
        %1318 = vmatpush.msra.mxu0 %v604
        %1319 = vmatpush.msra.mxu0 %v601
        %1320 = vmatpush.msra.mxu0 %v598
        %1321 = vmatpush.msra.mxu0 %v595
        %1322 = vmatpush.msra.mxu0 %v592
        %1323 = vmatpush.msra.mxu0 %v589
        %1324 = vmatpush.msra.mxu0 %v586
        %1325 = vmatmul.f32.gmra.mxu0 %v1137
        %v1326 = vpop.f32.mrf.mxu0
        %v1327 = vadd.f32 %v1307, %v1326
        %1328 = vdwg.mxu0
        %1329 = vmatpush.msra.mxu0 %v679
        %1330 = vmatpush.msra.mxu0 %v676
        %1331 = vmatpush.msra.mxu0 %v673
        %1332 = vmatpush.msra.mxu0 %v670
        %1333 = vmatpush.msra.mxu0 %v667
        %1334 = vmatpush.msra.mxu0 %v664
        %1335 = vmatpush.msra.mxu0 %v661
        %1336 = vmatpush.msra.mxu0 %v658
        %1337 = vmatpush.msra.mxu0 %v655
        %1338 = vmatpush.msra.mxu0 %v652
        %1339 = vmatpush.msra.mxu0 %v649
        %1340 = vmatpush.msra.mxu0 %v646
        %1341 = vmatpush.msra.mxu0 %v643
        %1342 = vmatpush.msra.mxu0 %v640
        %1343 = vmatpush.msra.mxu0 %v637
        %1344 = vmatpush.msra.mxu0 %v634
        %1345 = vmatmul.f32.gmra.mxu0 %v1140
        %v1346 = vpop.f32.mrf.mxu0
        %v1347 = vadd.f32 %v1327, %v1346
        %1348 = vdwg.mxu0
        %1349 = vmatpush.msra.mxu0 %v727
        %1350 = vmatpush.msra.mxu0 %v724
        %1351 = vmatpush.msra.mxu0 %v721
        %1352 = vmatpush.msra.mxu0 %v718
        %1353 = vmatpush.msra.mxu0 %v715
        %1354 = vmatpush.msra.mxu0 %v712
        %1355 = vmatpush.msra.mxu0 %v709
        %1356 = vmatpush.msra.mxu0 %v706
        %1357 = vmatpush.msra.mxu0 %v703
        %1358 = vmatpush.msra.mxu0 %v700
        %1359 = vmatpush.msra.mxu0 %v697
        %1360 = vmatpush.msra.mxu0 %v694
        %1361 = vmatpush.msra.mxu0 %v691
        %1362 = vmatpush.msra.mxu0 %v688
        %1363 = vmatpush.msra.mxu0 %v685
        %1364 = vmatpush.msra.mxu0 %v682
        %1365 = vmatmul.f32.gmra.mxu0 %v1141
        %v1366 = vpop.f32.mrf.mxu0
        %v1367 = vadd.f32 %v1347, %v1366
        %1368 = vdwg.mxu0
        %1369 = vmatpush.msra.mxu0 %v775
        %1370 = vmatpush.msra.mxu0 %v772
        %1371 = vmatpush.msra.mxu0 %v769
        %1372 = vmatpush.msra.mxu0 %v766
        %1373 = vmatpush.msra.mxu0 %v763
        %1374 = vmatpush.msra.mxu0 %v760
        %1375 = vmatpush.msra.mxu0 %v757
        %1376 = vmatpush.msra.mxu0 %v754
        %1377 = vmatpush.msra.mxu0 %v751
        %1378 = vmatpush.msra.mxu0 %v748
        %1379 = vmatpush.msra.mxu0 %v745
        %1380 = vmatpush.msra.mxu0 %v742
        %1381 = vmatpush.msra.mxu0 %v739
        %1382 = vmatpush.msra.mxu0 %v736
        %1383 = vmatpush.msra.mxu0 %v733
        %1384 = vmatpush.msra.mxu0 %v730
        %1385 = vmatmul.f32.gmra.mxu0 %v1142
        %v1386 = vpop.f32.mrf.mxu0
        %v1387 = vadd.f32 %v1367, %v1386
        %1388 = vdwg.mxu0
        %1389 = vmatpush.msra.mxu0 %v823
        %1390 = vmatpush.msra.mxu0 %v820
        %1391 = vmatpush.msra.mxu0 %v817
        %1392 = vmatpush.msra.mxu0 %v814
        %1393 = vmatpush.msra.mxu0 %v811
        %1394 = vmatpush.msra.mxu0 %v808
        %1395 = vmatpush.msra.mxu0 %v805
        %1396 = vmatpush.msra.mxu0 %v802
        %1397 = vmatpush.msra.mxu0 %v799
        %1398 = vmatpush.msra.mxu0 %v796
        %1399 = vmatpush.msra.mxu0 %v793
        %1400 = vmatpush.msra.mxu0 %v790
        %1401 = vmatpush.msra.mxu0 %v787
        %1402 = vmatpush.msra.mxu0 %v784
        %1403 = vmatpush.msra.mxu0 %v781
        %1404 = vmatpush.msra.mxu0 %v778
        %1405 = vmatmul.f32.gmra.mxu0 %v1143
        %v1406 = vpop.f32.mrf.mxu0
        %v1407 = vadd.f32 %v1387, %v1406
        %1408 = vdwg.mxu0
        %1409 = vmatpush.msra.mxu0 %v871
        %1410 = vmatpush.msra.mxu0 %v868
        %1411 = vmatpush.msra.mxu0 %v865
        %1412 = vmatpush.msra.mxu0 %v862
        %1413 = vmatpush.msra.mxu0 %v859
        %1414 = vmatpush.msra.mxu0 %v856
        %1415 = vmatpush.msra.mxu0 %v853
        %1416 = vmatpush.msra.mxu0 %v850
        %1417 = vmatpush.msra.mxu0 %v847
        %1418 = vmatpush.msra.mxu0 %v844
        %1419 = vmatpush.msra.mxu0 %v841
        %1420 = vmatpush.msra.mxu0 %v838
        %1421 = vmatpush.msra.mxu0 %v835
        %1422 = vmatpush.msra.mxu0 %v832
        %1423 = vmatpush.msra.mxu0 %v829
        %1424 = vmatpush.msra.mxu0 %v826
        %1425 = vmatmul.f32.gmra.mxu0 %v1144
        %v1426 = vpop.f32.mrf.mxu0
        %v1427 = vadd.f32 %v1407, %v1426
        %1428 = vdwg.mxu0
        %1429 = vmatpush.msra.mxu0 %v919
        %1430 = vmatpush.msra.mxu0 %v916
        %1431 = vmatpush.msra.mxu0 %v913
        %1432 = vmatpush.msra.mxu0 %v910
        %1433 = vmatpush.msra.mxu0 %v907
        %1434 = vmatpush.msra.mxu0 %v904
        %1435 = vmatpush.msra.mxu0 %v901
        %1436 = vmatpush.msra.mxu0 %v898
        %1437 = vmatpush.msra.mxu0 %v895
        %1438 = vmatpush.msra.mxu0 %v892
        %1439 = vmatpush.msra.mxu0 %v889
        %1440 = vmatpush.msra.mxu0 %v886
        %1441 = vmatpush.msra.mxu0 %v883
        %1442 = vmatpush.msra.mxu0 %v880
        %1443 = vmatpush.msra.mxu0 %v877
        %1444 = vmatpush.msra.mxu0 %v874
        %1445 = vmatmul.f32.gmra.mxu0 %v1145
        %v1446 = vpop.f32.mrf.mxu0
        %v1447 = vadd.f32 %v1427, %v1446
        %1448 = vdwg.mxu0
        %1449 = vmatpush.msra.mxu0 %v967
        %1450 = vmatpush.msra.mxu0 %v964
        %1451 = vmatpush.msra.mxu0 %v961
        %1452 = vmatpush.msra.mxu0 %v958
        %1453 = vmatpush.msra.mxu0 %v955
        %1454 = vmatpush.msra.mxu0 %v952
        %1455 = vmatpush.msra.mxu0 %v949
        %1456 = vmatpush.msra.mxu0 %v946
        %1457 = vmatpush.msra.mxu0 %v943
        %1458 = vmatpush.msra.mxu0 %v940
        %1459 = vmatpush.msra.mxu0 %v937
        %1460 = vmatpush.msra.mxu0 %v934
        %1461 = vmatpush.msra.mxu0 %v931
        %1462 = vmatpush.msra.mxu0 %v928
        %1463 = vmatpush.msra.mxu0 %v925
        %1464 = vmatpush.msra.mxu0 %v922
        %1465 = vmatmul.f32.gmra.mxu0 %v1146
        %v1466 = vpop.f32.mrf.mxu0
        %v1467 = vadd.f32 %v1447, %v1466
        %1468 = vdwg.mxu0
        %1469 = vmatpush.msra.mxu0 %v1015
        %1470 = vmatpush.msra.mxu0 %v1012
        %1471 = vmatpush.msra.mxu0 %v1009
        %1472 = vmatpush.msra.mxu0 %v1006
        %1473 = vmatpush.msra.mxu0 %v1003
        %1474 = vmatpush.msra.mxu0 %v1000
        %1475 = vmatpush.msra.mxu0 %v997
        %1476 = vmatpush.msra.mxu0 %v994
        %1477 = vmatpush.msra.mxu0 %v991
        %1478 = vmatpush.msra.mxu0 %v988
        %1479 = vmatpush.msra.mxu0 %v985
        %1480 = vmatpush.msra.mxu0 %v982
        %1481 = vmatpush.msra.mxu0 %v979
        %1482 = vmatpush.msra.mxu0 %v976
        %1483 = vmatpush.msra.mxu0 %v973
        %1484 = vmatpush.msra.mxu0 %v970
        %1485 = vmatmul.f32.gmra.mxu0 %v1147
        %v1486 = vpop.f32.mrf.mxu0
        %v1487 = vadd.f32 %v1467, %v1486
        %1488 = vdwg.mxu0
        %1489 = vmatpush.msra.mxu0 %v1063
        %1490 = vmatpush.msra.mxu0 %v1060
        %1491 = vmatpush.msra.mxu0 %v1057
        %1492 = vmatpush.msra.mxu0 %v1054
        %1493 = vmatpush.msra.mxu0 %v1051
        %1494 = vmatpush.msra.mxu0 %v1048
        %1495 = vmatpush.msra.mxu0 %v1045
        %1496 = vmatpush.msra.mxu0 %v1042
        %1497 = vmatpush.msra.mxu0 %v1039
        %1498 = vmatpush.msra.mxu0 %v1036
        %1499 = vmatpush.msra.mxu0 %v1033
        %1500 = vmatpush.msra.mxu0 %v1030
        %1501 = vmatpush.msra.mxu0 %v1027
        %1502 = vmatpush.msra.mxu0 %v1024
        %1503 = vmatpush.msra.mxu0 %v1021
        %1504 = vmatpush.msra.mxu0 %v1018
        %1505 = vmatmul.f32.gmra.mxu0 %v1149
        %v1506 = vpop.f32.mrf.mxu0
        %v1507 = vadd.f32 %v1487, %v1506
        %1508 = vdwg.mxu0
        %1509 = vmatpush.msra.mxu0 %v1111
        %1510 = vmatpush.msra.mxu0 %v1108
        %1511 = vmatpush.msra.mxu0 %v1105
        %1512 = vmatpush.msra.mxu0 %v1102
        %1513 = vmatpush.msra.mxu0 %v1099
        %1514 = vmatpush.msra.mxu0 %v1096
        %1515 = vmatpush.msra.mxu0 %v1093
        %1516 = vmatpush.msra.mxu0 %v1090
        %1517 = vmatpush.msra.mxu0 %v1087
        %1518 = vmatpush.msra.mxu0 %v1084
        %1519 = vmatpush.msra.mxu0 %v1081
        %1520 = vmatpush.msra.mxu0 %v1078
        %1521 = vmatpush.msra.mxu0 %v1075
        %1522 = vmatpush.msra.mxu0 %v1072
        %1523 = vmatpush.msra.mxu0 %v1069
        %1524 = vmatpush.msra.mxu0 %v1066
        %1525 = vmatmul.f32.gmra.mxu0 %v1150
        %v1526 = vpop.f32.mrf.mxu0
        %v1527 = vadd.f32 %v1507, %v1526
        %1528 = vdwg.mxu0
        %1529 = vmatpush.msra.mxu0 %v296
        %1530 = vmatpush.msra.mxu0 %v293
        %1531 = vmatpush.msra.mxu0 %v290
        %1532 = vmatpush.msra.mxu0 %v287
        %1533 = vmatpush.msra.mxu0 %v284
        %1534 = vmatpush.msra.mxu0 %v281
        %1535 = vmatpush.msra.mxu0 %v278
        %1536 = vmatpush.msra.mxu0 %v275
        %1537 = vmatpush.msra.mxu0 %v272
        %1538 = vmatpush.msra.mxu0 %v269
        %1539 = vmatpush.msra.mxu0 %v266
        %1540 = vmatpush.msra.mxu0 %v263
        %1541 = vmatpush.msra.mxu0 %v260
        %1542 = vmatpush.msra.mxu0 %v257
        %1543 = vmatpush.msra.mxu0 %v254
        %1544 = vmatpush.msra.mxu0 %v251
        %1545 = vmatmul.f32.gmra.mxu0 %v1130
        %v1546 = vpop.f32.mrf.mxu0
        %v1547 = vadd.f32 %v1117, %v1546
        %1548 = vdwg.mxu0
        %1549 = vmatpush.msra.mxu0 %v344
        %1550 = vmatpush.msra.mxu0 %v341
        %1551 = vmatpush.msra.mxu0 %v338
        %1552 = vmatpush.msra.mxu0 %v335
        %1553 = vmatpush.msra.mxu0 %v332
        %1554 = vmatpush.msra.mxu0 %v329
        %1555 = vmatpush.msra.mxu0 %v326
        %1556 = vmatpush.msra.mxu0 %v323
        %1557 = vmatpush.msra.mxu0 %v320
        %1558 = vmatpush.msra.mxu0 %v317
        %1559 = vmatpush.msra.mxu0 %v314
        %1560 = vmatpush.msra.mxu0 %v311
        %1561 = vmatpush.msra.mxu0 %v308
        %1562 = vmatpush.msra.mxu0 %v305
        %1563 = vmatpush.msra.mxu0 %v302
        %1564 = vmatpush.msra.mxu0 %v299
        %1565 = vmatmul.f32.gmra.mxu0 %v1131
        %v1566 = vpop.f32.mrf.mxu0
        %v1567 = vadd.f32 %v1547, %v1566
        %1568 = vdwg.mxu0
        %1569 = vmatpush.msra.mxu0 %v392
        %1570 = vmatpush.msra.mxu0 %v389
        %1571 = vmatpush.msra.mxu0 %v386
        %1572 = vmatpush.msra.mxu0 %v383
        %1573 = vmatpush.msra.mxu0 %v380
        %1574 = vmatpush.msra.mxu0 %v377
        %1575 = vmatpush.msra.mxu0 %v374
        %1576 = vmatpush.msra.mxu0 %v371
        %1577 = vmatpush.msra.mxu0 %v368
        %1578 = vmatpush.msra.mxu0 %v365
        %1579 = vmatpush.msra.mxu0 %v362
        %1580 = vmatpush.msra.mxu0 %v359
        %1581 = vmatpush.msra.mxu0 %v356
        %1582 = vmatpush.msra.mxu0 %v353
        %1583 = vmatpush.msra.mxu0 %v350
        %1584 = vmatpush.msra.mxu0 %v347
        %1585 = vmatmul.f32.gmra.mxu0 %v1132
        %v1586 = vpop.f32.mrf.mxu0
        %v1587 = vadd.f32 %v1567, %v1586
        %1588 = vdwg.mxu0
        %1589 = vmatpush.msra.mxu0 %v440
        %1590 = vmatpush.msra.mxu0 %v437
        %1591 = vmatpush.msra.mxu0 %v434
        %1592 = vmatpush.msra.mxu0 %v431
        %1593 = vmatpush.msra.mxu0 %v428
        %1594 = vmatpush.msra.mxu0 %v425
        %1595 = vmatpush.msra.mxu0 %v422
        %1596 = vmatpush.msra.mxu0 %v419
        %1597 = vmatpush.msra.mxu0 %v416
        %1598 = vmatpush.msra.mxu0 %v413
        %1599 = vmatpush.msra.mxu0 %v410
        %1600 = vmatpush.msra.mxu0 %v407
        %1601 = vmatpush.msra.mxu0 %v404
        %1602 = vmatpush.msra.mxu0 %v401
        %1603 = vmatpush.msra.mxu0 %v398
        %1604 = vmatpush.msra.mxu0 %v395
        %1605 = vmatmul.f32.gmra.mxu0 %v1133
        %v1606 = vpop.f32.mrf.mxu0
        %v1607 = vadd.f32 %v1587, %v1606
        %1608 = vdwg.mxu0
        %1609 = vmatpush.msra.mxu0 %v488
        %1610 = vmatpush.msra.mxu0 %v485
        %1611 = vmatpush.msra.mxu0 %v482
        %1612 = vmatpush.msra.mxu0 %v479
        %1613 = vmatpush.msra.mxu0 %v476
        %1614 = vmatpush.msra.mxu0 %v473
        %1615 = vmatpush.msra.mxu0 %v470
        %1616 = vmatpush.msra.mxu0 %v467
        %1617 = vmatpush.msra.mxu0 %v464
        %1618 = vmatpush.msra.mxu0 %v461
        %1619 = vmatpush.msra.mxu0 %v458
        %1620 = vmatpush.msra.mxu0 %v455
        %1621 = vmatpush.msra.mxu0 %v452
        %1622 = vmatpush.msra.mxu0 %v449
        %1623 = vmatpush.msra.mxu0 %v446
        %1624 = vmatpush.msra.mxu0 %v443
        %1625 = vmatmul.f32.gmra.mxu0 %v1134
        %v1626 = vpop.f32.mrf.mxu0
        %v1627 = vadd.f32 %v1607, %v1626
        %1628 = vdwg.mxu0
        %1629 = vmatpush.msra.mxu0 %v536
        %1630 = vmatpush.msra.mxu0 %v533
        %1631 = vmatpush.msra.mxu0 %v530
        %1632 = vmatpush.msra.mxu0 %v527
        %1633 = vmatpush.msra.mxu0 %v524
        %1634 = vmatpush.msra.mxu0 %v521
        %1635 = vmatpush.msra.mxu0 %v518
        %1636 = vmatpush.msra.mxu0 %v515
        %1637 = vmatpush.msra.mxu0 %v512
        %1638 = vmatpush.msra.mxu0 %v509
        %1639 = vmatpush.msra.mxu0 %v506
        %1640 = vmatpush.msra.mxu0 %v503
        %1641 = vmatpush.msra.mxu0 %v500
        %1642 = vmatpush.msra.mxu0 %v497
        %1643 = vmatpush.msra.mxu0 %v494
        %1644 = vmatpush.msra.mxu0 %v491
        %1645 = vmatmul.f32.gmra.mxu0 %v1135
        %v1646 = vpop.f32.mrf.mxu0
        %v1647 = vadd.f32 %v1627, %v1646
        %1648 = vdwg.mxu0
        %1649 = vmatpush.msra.mxu0 %v584
        %1650 = vmatpush.msra.mxu0 %v581
        %1651 = vmatpush.msra.mxu0 %v578
        %1652 = vmatpush.msra.mxu0 %v575
        %1653 = vmatpush.msra.mxu0 %v572
        %1654 = vmatpush.msra.mxu0 %v569
        %1655 = vmatpush.msra.mxu0 %v566
        %1656 = vmatpush.msra.mxu0 %v563
        %1657 = vmatpush.msra.mxu0 %v560
        %1658 = vmatpush.msra.mxu0 %v557
        %1659 = vmatpush.msra.mxu0 %v554
        %1660 = vmatpush.msra.mxu0 %v551
        %1661 = vmatpush.msra.mxu0 %v548
        %1662 = vmatpush.msra.mxu0 %v545
        %1663 = vmatpush.msra.mxu0 %v542
        %1664 = vmatpush.msra.mxu0 %v539
        %1665 = vmatmul.f32.gmra.mxu0 %v1136
        %v1666 = vpop.f32.mrf.mxu0
        %v1667 = vadd.f32 %v1647, %v1666
        %1668 = vdwg.mxu0
        %1669 = vmatpush.msra.mxu0 %v632
        %1670 = vmatpush.msra.mxu0 %v629
        %1671 = vmatpush.msra.mxu0 %v626
        %1672 = vmatpush.msra.mxu0 %v623
        %1673 = vmatpush.msra.mxu0 %v620
        %1674 = vmatpush.msra.mxu0 %v617
        %1675 = vmatpush.msra.mxu0 %v614
        %1676 = vmatpush.msra.mxu0 %v611
        %1677 = vmatpush.msra.mxu0 %v608
        %1678 = vmatpush.msra.mxu0 %v605
        %1679 = vmatpush.msra.mxu0 %v602
        %1680 = vmatpush.msra.mxu0 %v599
        %1681 = vmatpush.msra.mxu0 %v596
        %1682 = vmatpush.msra.mxu0 %v593
        %1683 = vmatpush.msra.mxu0 %v590
        %1684 = vmatpush.msra.mxu0 %v587
        %1685 = vmatmul.f32.gmra.mxu0 %v1137
        %v1686 = vpop.f32.mrf.mxu0
        %v1687 = vadd.f32 %v1667, %v1686
        %1688 = vdwg.mxu0
        %1689 = vmatpush.msra.mxu0 %v680
        %1690 = vmatpush.msra.mxu0 %v677
        %1691 = vmatpush.msra.mxu0 %v674
        %1692 = vmatpush.msra.mxu0 %v671
        %1693 = vmatpush.msra.mxu0 %v668
        %1694 = vmatpush.msra.mxu0 %v665
        %1695 = vmatpush.msra.mxu0 %v662
        %1696 = vmatpush.msra.mxu0 %v659
        %1697 = vmatpush.msra.mxu0 %v656
        %1698 = vmatpush.msra.mxu0 %v653
        %1699 = vmatpush.msra.mxu0 %v650
        %1700 = vmatpush.msra.mxu0 %v647
        %1701 = vmatpush.msra.mxu0 %v644
        %1702 = vmatpush.msra.mxu0 %v641
        %1703 = vmatpush.msra.mxu0 %v638
        %1704 = vmatpush.msra.mxu0 %v635
        %1705 = vmatmul.f32.gmra.mxu0 %v1140
        %v1706 = vpop.f32.mrf.mxu0
        %v1707 = vadd.f32 %v1687, %v1706
        %1708 = vdwg.mxu0
        %1709 = vmatpush.msra.mxu0 %v728
        %1710 = vmatpush.msra.mxu0 %v725
        %1711 = vmatpush.msra.mxu0 %v722
        %1712 = vmatpush.msra.mxu0 %v719
        %1713 = vmatpush.msra.mxu0 %v716
        %1714 = vmatpush.msra.mxu0 %v713
        %1715 = vmatpush.msra.mxu0 %v710
        %1716 = vmatpush.msra.mxu0 %v707
        %1717 = vmatpush.msra.mxu0 %v704
        %1718 = vmatpush.msra.mxu0 %v701
        %1719 = vmatpush.msra.mxu0 %v698
        %1720 = vmatpush.msra.mxu0 %v695
        %1721 = vmatpush.msra.mxu0 %v692
        %1722 = vmatpush.msra.mxu0 %v689
        %1723 = vmatpush.msra.mxu0 %v686
        %1724 = vmatpush.msra.mxu0 %v683
        %1725 = vmatmul.f32.gmra.mxu0 %v1141
        %v1726 = vpop.f32.mrf.mxu0
        %v1727 = vadd.f32 %v1707, %v1726
        %1728 = vdwg.mxu0
        %1729 = vmatpush.msra.mxu0 %v776
        %1730 = vmatpush.msra.mxu0 %v773
        %1731 = vmatpush.msra.mxu0 %v770
        %1732 = vmatpush.msra.mxu0 %v767
        %1733 = vmatpush.msra.mxu0 %v764
        %1734 = vmatpush.msra.mxu0 %v761
        %1735 = vmatpush.msra.mxu0 %v758
        %1736 = vmatpush.msra.mxu0 %v755
        %1737 = vmatpush.msra.mxu0 %v752
        %1738 = vmatpush.msra.mxu0 %v749
        %1739 = vmatpush.msra.mxu0 %v746
        %1740 = vmatpush.msra.mxu0 %v743
        %1741 = vmatpush.msra.mxu0 %v740
        %1742 = vmatpush.msra.mxu0 %v737
        %1743 = vmatpush.msra.mxu0 %v734
        %1744 = vmatpush.msra.mxu0 %v731
        %1745 = vmatmul.f32.gmra.mxu0 %v1142
        %v1746 = vpop.f32.mrf.mxu0
        %v1747 = vadd.f32 %v1727, %v1746
        %1748 = vdwg.mxu0
        %1749 = vmatpush.msra.mxu0 %v824
        %1750 = vmatpush.msra.mxu0 %v821
        %1751 = vmatpush.msra.mxu0 %v818
        %1752 = vmatpush.msra.mxu0 %v815
        %1753 = vmatpush.msra.mxu0 %v812
        %1754 = vmatpush.msra.mxu0 %v809
        %1755 = vmatpush.msra.mxu0 %v806
        %1756 = vmatpush.msra.mxu0 %v803
        %1757 = vmatpush.msra.mxu0 %v800
        %1758 = vmatpush.msra.mxu0 %v797
        %1759 = vmatpush.msra.mxu0 %v794
        %1760 = vmatpush.msra.mxu0 %v791
        %1761 = vmatpush.msra.mxu0 %v788
        %1762 = vmatpush.msra.mxu0 %v785
        %1763 = vmatpush.msra.mxu0 %v782
        %1764 = vmatpush.msra.mxu0 %v779
        %1765 = vmatmul.f32.gmra.mxu0 %v1143
        %v1766 = vpop.f32.mrf.mxu0
        %v1767 = vadd.f32 %v1747, %v1766
        %1768 = vdwg.mxu0
        %1769 = vmatpush.msra.mxu0 %v872
        %1770 = vmatpush.msra.mxu0 %v869
        %1771 = vmatpush.msra.mxu0 %v866
        %1772 = vmatpush.msra.mxu0 %v863
        %1773 = vmatpush.msra.mxu0 %v860
        %1774 = vmatpush.msra.mxu0 %v857
        %1775 = vmatpush.msra.mxu0 %v854
        %1776 = vmatpush.msra.mxu0 %v851
        %1777 = vmatpush.msra.mxu0 %v848
        %1778 = vmatpush.msra.mxu0 %v845
        %1779 = vmatpush.msra.mxu0 %v842
        %1780 = vmatpush.msra.mxu0 %v839
        %1781 = vmatpush.msra.mxu0 %v836
        %1782 = vmatpush.msra.mxu0 %v833
        %1783 = vmatpush.msra.mxu0 %v830
        %1784 = vmatpush.msra.mxu0 %v827
        %1785 = vmatmul.f32.gmra.mxu0 %v1144
        %v1786 = vpop.f32.mrf.mxu0
        %v1787 = vadd.f32 %v1767, %v1786
        %1788 = vdwg.mxu0
        %1789 = vmatpush.msra.mxu0 %v920
        %1790 = vmatpush.msra.mxu0 %v917
        %1791 = vmatpush.msra.mxu0 %v914
        %1792 = vmatpush.msra.mxu0 %v911
        %1793 = vmatpush.msra.mxu0 %v908
        %1794 = vmatpush.msra.mxu0 %v905
        %1795 = vmatpush.msra.mxu0 %v902
        %1796 = vmatpush.msra.mxu0 %v899
        %1797 = vmatpush.msra.mxu0 %v896
        %1798 = vmatpush.msra.mxu0 %v893
        %1799 = vmatpush.msra.mxu0 %v890
        %1800 = vmatpush.msra.mxu0 %v887
        %1801 = vmatpush.msra.mxu0 %v884
        %1802 = vmatpush.msra.mxu0 %v881
        %1803 = vmatpush.msra.mxu0 %v878
        %1804 = vmatpush.msra.mxu0 %v875
        %1805 = vmatmul.f32.gmra.mxu0 %v1145
        %v1806 = vpop.f32.mrf.mxu0
        %v1807 = vadd.f32 %v1787, %v1806
        %1808 = vdwg.mxu0
        %1809 = vmatpush.msra.mxu0 %v968
        %1810 = vmatpush.msra.mxu0 %v965
        %1811 = vmatpush.msra.mxu0 %v962
        %1812 = vmatpush.msra.mxu0 %v959
        %1813 = vmatpush.msra.mxu0 %v956
        %1814 = vmatpush.msra.mxu0 %v953
        %1815 = vmatpush.msra.mxu0 %v950
        %1816 = vmatpush.msra.mxu0 %v947
        %1817 = vmatpush.msra.mxu0 %v944
        %1818 = vmatpush.msra.mxu0 %v941
        %1819 = vmatpush.msra.mxu0 %v938
        %1820 = vmatpush.msra.mxu0 %v935
        %1821 = vmatpush.msra.mxu0 %v932
        %1822 = vmatpush.msra.mxu0 %v929
        %1823 = vmatpush.msra.mxu0 %v926
        %1824 = vmatpush.msra.mxu0 %v923
        %1825 = vmatmul.f32.gmra.mxu0 %v1146
        %v1826 = vpop.f32.mrf.mxu0
        %v1827 = vadd.f32 %v1807, %v1826
        %1828 = vdwg.mxu0
        %1829 = vmatpush.msra.mxu0 %v1016
        %1830 = vmatpush.msra.mxu0 %v1013
        %1831 = vmatpush.msra.mxu0 %v1010
        %1832 = vmatpush.msra.mxu0 %v1007
        %1833 = vmatpush.msra.mxu0 %v1004
        %1834 = vmatpush.msra.mxu0 %v1001
        %1835 = vmatpush.msra.mxu0 %v998
        %1836 = vmatpush.msra.mxu0 %v995
        %1837 = vmatpush.msra.mxu0 %v992
        %1838 = vmatpush.msra.mxu0 %v989
        %1839 = vmatpush.msra.mxu0 %v986
        %1840 = vmatpush.msra.mxu0 %v983
        %1841 = vmatpush.msra.mxu0 %v980
        %1842 = vmatpush.msra.mxu0 %v977
        %1843 = vmatpush.msra.mxu0 %v974
        %1844 = vmatpush.msra.mxu0 %v971
        %1845 = vmatmul.f32.gmra.mxu0 %v1147
        %v1846 = vpop.f32.mrf.mxu0
        %v1847 = vadd.f32 %v1827, %v1846
        %1848 = vdwg.mxu0
        %1849 = vmatpush.msra.mxu0 %v1064
        %1850 = vmatpush.msra.mxu0 %v1061
        %1851 = vmatpush.msra.mxu0 %v1058
        %1852 = vmatpush.msra.mxu0 %v1055
        %1853 = vmatpush.msra.mxu0 %v1052
        %1854 = vmatpush.msra.mxu0 %v1049
        %1855 = vmatpush.msra.mxu0 %v1046
        %1856 = vmatpush.msra.mxu0 %v1043
        %1857 = vmatpush.msra.mxu0 %v1040
        %1858 = vmatpush.msra.mxu0 %v1037
        %1859 = vmatpush.msra.mxu0 %v1034
        %1860 = vmatpush.msra.mxu0 %v1031
        %1861 = vmatpush.msra.mxu0 %v1028
        %1862 = vmatpush.msra.mxu0 %v1025
        %1863 = vmatpush.msra.mxu0 %v1022
        %1864 = vmatpush.msra.mxu0 %v1019
        %1865 = vmatmul.f32.gmra.mxu0 %v1149
        %v1866 = vpop.f32.mrf.mxu0
        %v1867 = vadd.f32 %v1847, %v1866
        %1868 = vdwg.mxu0
        %1869 = vmatpush.msra.mxu0 %v1112
        %1870 = vmatpush.msra.mxu0 %v1109
        %1871 = vmatpush.msra.mxu0 %v1106
        %1872 = vmatpush.msra.mxu0 %v1103
        %1873 = vmatpush.msra.mxu0 %v1100
        %1874 = vmatpush.msra.mxu0 %v1097
        %1875 = vmatpush.msra.mxu0 %v1094
        %1876 = vmatpush.msra.mxu0 %v1091
        %1877 = vmatpush.msra.mxu0 %v1088
        %1878 = vmatpush.msra.mxu0 %v1085
        %1879 = vmatpush.msra.mxu0 %v1082
        %1880 = vmatpush.msra.mxu0 %v1079
        %1881 = vmatpush.msra.mxu0 %v1076
        %1882 = vmatpush.msra.mxu0 %v1073
        %1883 = vmatpush.msra.mxu0 %v1070
        %1884 = vmatpush.msra.mxu0 %v1067
        %1885 = vmatmul.f32.gmra.mxu0 %v1150
        %v1886 = vpop.f32.mrf.mxu0
        %v1887 = vadd.f32 %v1867, %v1886
        %1888 = vdwg.mxu0
        %1889 = vmatpush.msra.mxu0 %v297
        %1890 = vmatpush.msra.mxu0 %v294
        %1891 = vmatpush.msra.mxu0 %v291
        %1892 = vmatpush.msra.mxu0 %v288
        %1893 = vmatpush.msra.mxu0 %v285
        %1894 = vmatpush.msra.mxu0 %v282
        %1895 = vmatpush.msra.mxu0 %v279
        %1896 = vmatpush.msra.mxu0 %v276
        %1897 = vmatpush.msra.mxu0 %v273
        %1898 = vmatpush.msra.mxu0 %v270
        %1899 = vmatpush.msra.mxu0 %v267
        %1900 = vmatpush.msra.mxu0 %v264
        %1901 = vmatpush.msra.mxu0 %v261
        %1902 = vmatpush.msra.mxu0 %v258
        %1903 = vmatpush.msra.mxu0 %v255
        %1904 = vmatpush.msra.mxu0 %v252
        %1905 = vmatmul.f32.gmra.mxu0 %v1130
        %v1906 = vpop.f32.mrf.mxu0
        %v1907 = vadd.f32 %v1118, %v1906
        %1908 = vdwg.mxu0
        %1909 = vmatpush.msra.mxu0 %v345
        %1910 = vmatpush.msra.mxu0 %v342
        %1911 = vmatpush.msra.mxu0 %v339
        %1912 = vmatpush.msra.mxu0 %v336
        %1913 = vmatpush.msra.mxu0 %v333
        %1914 = vmatpush.msra.mxu0 %v330
        %1915 = vmatpush.msra.mxu0 %v327
        %1916 = vmatpush.msra.mxu0 %v324
        %1917 = vmatpush.msra.mxu0 %v321
        %1918 = vmatpush.msra.mxu0 %v318
        %1919 = vmatpush.msra.mxu0 %v315
        %1920 = vmatpush.msra.mxu0 %v312
        %1921 = vmatpush.msra.mxu0 %v309
        %1922 = vmatpush.msra.mxu0 %v306
        %1923 = vmatpush.msra.mxu0 %v303
        %1924 = vmatpush.msra.mxu0 %v300
        %1925 = vmatmul.f32.gmra.mxu0 %v1131
        %v1926 = vpop.f32.mrf.mxu0
        %v1927 = vadd.f32 %v1907, %v1926
        %1928 = vdwg.mxu0
        %1929 = vmatpush.msra.mxu0 %v393
        %1930 = vmatpush.msra.mxu0 %v390
        %1931 = vmatpush.msra.mxu0 %v387
        %1932 = vmatpush.msra.mxu0 %v384
        %1933 = vmatpush.msra.mxu0 %v381
        %1934 = vmatpush.msra.mxu0 %v378
        %1935 = vmatpush.msra.mxu0 %v375
        %1936 = vmatpush.msra.mxu0 %v372
        %1937 = vmatpush.msra.mxu0 %v369
        %1938 = vmatpush.msra.mxu0 %v366
        %1939 = vmatpush.msra.mxu0 %v363
        %1940 = vmatpush.msra.mxu0 %v360
        %1941 = vmatpush.msra.mxu0 %v357
        %1942 = vmatpush.msra.mxu0 %v354
        %1943 = vmatpush.msra.mxu0 %v351
        %1944 = vmatpush.msra.mxu0 %v348
        %1945 = vmatmul.f32.gmra.mxu0 %v1132
        %v1946 = vpop.f32.mrf.mxu0
        %v1947 = vadd.f32 %v1927, %v1946
        %1948 = vdwg.mxu0
        %1949 = vmatpush.msra.mxu0 %v441
        %1950 = vmatpush.msra.mxu0 %v438
        %1951 = vmatpush.msra.mxu0 %v435
        %1952 = vmatpush.msra.mxu0 %v432
        %1953 = vmatpush.msra.mxu0 %v429
        %1954 = vmatpush.msra.mxu0 %v426
        %1955 = vmatpush.msra.mxu0 %v423
        %1956 = vmatpush.msra.mxu0 %v420
        %1957 = vmatpush.msra.mxu0 %v417
        %1958 = vmatpush.msra.mxu0 %v414
        %1959 = vmatpush.msra.mxu0 %v411
        %1960 = vmatpush.msra.mxu0 %v408
        %1961 = vmatpush.msra.mxu0 %v405
        %1962 = vmatpush.msra.mxu0 %v402
        %1963 = vmatpush.msra.mxu0 %v399
        %1964 = vmatpush.msra.mxu0 %v396
        %1965 = vmatmul.f32.gmra.mxu0 %v1133
        %v1966 = vpop.f32.mrf.mxu0
        %v1967 = vadd.f32 %v1947, %v1966
        %1968 = vdwg.mxu0
        %1969 = vmatpush.msra.mxu0 %v489
        %1970 = vmatpush.msra.mxu0 %v486
        %1971 = vmatpush.msra.mxu0 %v483
        %1972 = vmatpush.msra.mxu0 %v480
        %1973 = vmatpush.msra.mxu0 %v477
        %1974 = vmatpush.msra.mxu0 %v474
        %1975 = vmatpush.msra.mxu0 %v471
        %1976 = vmatpush.msra.mxu0 %v468
        %1977 = vmatpush.msra.mxu0 %v465
        %1978 = vmatpush.msra.mxu0 %v462
        %1979 = vmatpush.msra.mxu0 %v459
        %1980 = vmatpush.msra.mxu0 %v456
        %1981 = vmatpush.msra.mxu0 %v453
        %1982 = vmatpush.msra.mxu0 %v450
        %1983 = vmatpush.msra.mxu0 %v447
        %1984 = vmatpush.msra.mxu0 %v444
        %1985 = vmatmul.f32.gmra.mxu0 %v1134
        %v1986 = vpop.f32.mrf.mxu0
        %v1987 = vadd.f32 %v1967, %v1986
        %1988 = vdwg.mxu0
        %1989 = vmatpush.msra.mxu0 %v537
        %1990 = vmatpush.msra.mxu0 %v534
        %1991 = vmatpush.msra.mxu0 %v531
        %1992 = vmatpush.msra.mxu0 %v528
        %1993 = vmatpush.msra.mxu0 %v525
        %1994 = vmatpush.msra.mxu0 %v522
        %1995 = vmatpush.msra.mxu0 %v519
        %1996 = vmatpush.msra.mxu0 %v516
        %1997 = vmatpush.msra.mxu0 %v513
        %1998 = vmatpush.msra.mxu0 %v510
        %1999 = vmatpush.msra.mxu0 %v507
        %2000 = vmatpush.msra.mxu0 %v504
        %2001 = vmatpush.msra.mxu0 %v501
        %2002 = vmatpush.msra.mxu0 %v498
        %2003 = vmatpush.msra.mxu0 %v495
        %2004 = vmatpush.msra.mxu0 %v492
        %2005 = vmatmul.f32.gmra.mxu0 %v1135
        %v2006 = vpop.f32.mrf.mxu0
        %v2007 = vadd.f32 %v1987, %v2006
        %2008 = vdwg.mxu0
        %2009 = vmatpush.msra.mxu0 %v585
        %2010 = vmatpush.msra.mxu0 %v582
        %2011 = vmatpush.msra.mxu0 %v579
        %2012 = vmatpush.msra.mxu0 %v576
        %2013 = vmatpush.msra.mxu0 %v573
        %2014 = vmatpush.msra.mxu0 %v570
        %2015 = vmatpush.msra.mxu0 %v567
        %2016 = vmatpush.msra.mxu0 %v564
        %2017 = vmatpush.msra.mxu0 %v561
        %2018 = vmatpush.msra.mxu0 %v558
        %2019 = vmatpush.msra.mxu0 %v555
        %2020 = vmatpush.msra.mxu0 %v552
        %2021 = vmatpush.msra.mxu0 %v549
        %2022 = vmatpush.msra.mxu0 %v546
        %2023 = vmatpush.msra.mxu0 %v543
        %2024 = vmatpush.msra.mxu0 %v540
        %2025 = vmatmul.f32.gmra.mxu0 %v1136
        %v2026 = vpop.f32.mrf.mxu0
        %v2027 = vadd.f32 %v2007, %v2026
        %2028 = vdwg.mxu0
        %2029 = vmatpush.msra.mxu0 %v633
        %2030 = vmatpush.msra.mxu0 %v630
        %2031 = vmatpush.msra.mxu0 %v627
        %2032 = vmatpush.msra.mxu0 %v624
        %2033 = vmatpush.msra.mxu0 %v621
        %2034 = vmatpush.msra.mxu0 %v618
        %2035 = vmatpush.msra.mxu0 %v615
        %2036 = vmatpush.msra.mxu0 %v612
        %2037 = vmatpush.msra.mxu0 %v609
        %2038 = vmatpush.msra.mxu0 %v606
        %2039 = vmatpush.msra.mxu0 %v603
        %2040 = vmatpush.msra.mxu0 %v600
        %2041 = vmatpush.msra.mxu0 %v597
        %2042 = vmatpush.msra.mxu0 %v594
        %2043 = vmatpush.msra.mxu0 %v591
        %2044 = vmatpush.msra.mxu0 %v588
        %2045 = vmatmul.f32.gmra.mxu0 %v1137
        %v2046 = vpop.f32.mrf.mxu0
        %v2047 = vadd.f32 %v2027, %v2046
        %2048 = vdwg.mxu0
        %2049 = vmatpush.msra.mxu0 %v681
        %2050 = vmatpush.msra.mxu0 %v678
        %2051 = vmatpush.msra.mxu0 %v675
        %2052 = vmatpush.msra.mxu0 %v672
        %2053 = vmatpush.msra.mxu0 %v669
        %2054 = vmatpush.msra.mxu0 %v666
        %2055 = vmatpush.msra.mxu0 %v663
        %2056 = vmatpush.msra.mxu0 %v660
        %2057 = vmatpush.msra.mxu0 %v657
        %2058 = vmatpush.msra.mxu0 %v654
        %2059 = vmatpush.msra.mxu0 %v651
        %2060 = vmatpush.msra.mxu0 %v648
        %2061 = vmatpush.msra.mxu0 %v645
        %2062 = vmatpush.msra.mxu0 %v642
        %2063 = vmatpush.msra.mxu0 %v639
        %2064 = vmatpush.msra.mxu0 %v636
        %2065 = vmatmul.f32.gmra.mxu0 %v1140
        %v2066 = vpop.f32.mrf.mxu0
        %v2067 = vadd.f32 %v2047, %v2066
        %2068 = vdwg.mxu0
        %2069 = vmatpush.msra.mxu0 %v729
        %2070 = vmatpush.msra.mxu0 %v726
        %2071 = vmatpush.msra.mxu0 %v723
        %2072 = vmatpush.msra.mxu0 %v720
        %2073 = vmatpush.msra.mxu0 %v717
        %2074 = vmatpush.msra.mxu0 %v714
        %2075 = vmatpush.msra.mxu0 %v711
        %2076 = vmatpush.msra.mxu0 %v708
        %2077 = vmatpush.msra.mxu0 %v705
        %2078 = vmatpush.msra.mxu0 %v702
        %2079 = vmatpush.msra.mxu0 %v699
        %2080 = vmatpush.msra.mxu0 %v696
        %2081 = vmatpush.msra.mxu0 %v693
        %2082 = vmatpush.msra.mxu0 %v690
        %2083 = vmatpush.msra.mxu0 %v687
        %2084 = vmatpush.msra.mxu0 %v684
        %2085 = vmatmul.f32.gmra.mxu0 %v1141
        %v2086 = vpop.f32.mrf.mxu0
        %v2087 = vadd.f32 %v2067, %v2086
        %2088 = vdwg.mxu0
        %2089 = vmatpush.msra.mxu0 %v777
        %2090 = vmatpush.msra.mxu0 %v774
        %2091 = vmatpush.msra.mxu0 %v771
        %2092 = vmatpush.msra.mxu0 %v768
        %2093 = vmatpush.msra.mxu0 %v765
        %2094 = vmatpush.msra.mxu0 %v762
        %2095 = vmatpush.msra.mxu0 %v759
        %2096 = vmatpush.msra.mxu0 %v756
        %2097 = vmatpush.msra.mxu0 %v753
        %2098 = vmatpush.msra.mxu0 %v750
        %2099 = vmatpush.msra.mxu0 %v747
        %2100 = vmatpush.msra.mxu0 %v744
        %2101 = vmatpush.msra.mxu0 %v741
        %2102 = vmatpush.msra.mxu0 %v738
        %2103 = vmatpush.msra.mxu0 %v735
        %2104 = vmatpush.msra.mxu0 %v732
        %2105 = vmatmul.f32.gmra.mxu0 %v1142
        %v2106 = vpop.f32.mrf.mxu0
        %v2107 = vadd.f32 %v2087, %v2106
        %2108 = vdwg.mxu0
        %2109 = vmatpush.msra.mxu0 %v825
        %2110 = vmatpush.msra.mxu0 %v822
        %2111 = vmatpush.msra.mxu0 %v819
        %2112 = vmatpush.msra.mxu0 %v816
        %2113 = vmatpush.msra.mxu0 %v813
        %2114 = vmatpush.msra.mxu0 %v810
        %2115 = vmatpush.msra.mxu0 %v807
        %2116 = vmatpush.msra.mxu0 %v804
        %2117 = vmatpush.msra.mxu0 %v801
        %2118 = vmatpush.msra.mxu0 %v798
        %2119 = vmatpush.msra.mxu0 %v795
        %2120 = vmatpush.msra.mxu0 %v792
        %2121 = vmatpush.msra.mxu0 %v789
        %2122 = vmatpush.msra.mxu0 %v786
        %2123 = vmatpush.msra.mxu0 %v783
        %2124 = vmatpush.msra.mxu0 %v780
        %2125 = vmatmul.f32.gmra.mxu0 %v1143
        %v2126 = vpop.f32.mrf.mxu0
        %v2127 = vadd.f32 %v2107, %v2126
        %2128 = vdwg.mxu0
        %2129 = vmatpush.msra.mxu0 %v873
        %2130 = vmatpush.msra.mxu0 %v870
        %2131 = vmatpush.msra.mxu0 %v867
        %2132 = vmatpush.msra.mxu0 %v864
        %2133 = vmatpush.msra.mxu0 %v861
        %2134 = vmatpush.msra.mxu0 %v858
        %2135 = vmatpush.msra.mxu0 %v855
        %2136 = vmatpush.msra.mxu0 %v852
        %2137 = vmatpush.msra.mxu0 %v849
        %2138 = vmatpush.msra.mxu0 %v846
        %2139 = vmatpush.msra.mxu0 %v843
        %2140 = vmatpush.msra.mxu0 %v840
        %2141 = vmatpush.msra.mxu0 %v837
        %2142 = vmatpush.msra.mxu0 %v834
        %2143 = vmatpush.msra.mxu0 %v831
        %2144 = vmatpush.msra.mxu0 %v828
        %2145 = vmatmul.f32.gmra.mxu0 %v1144
        %v2146 = vpop.f32.mrf.mxu0
        %v2147 = vadd.f32 %v2127, %v2146
        %2148 = vdwg.mxu0
        %2149 = vmatpush.msra.mxu0 %v921
        %2150 = vmatpush.msra.mxu0 %v918
        %2151 = vmatpush.msra.mxu0 %v915
        %2152 = vmatpush.msra.mxu0 %v912
        %2153 = vmatpush.msra.mxu0 %v909
        %2154 = vmatpush.msra.mxu0 %v906
        %2155 = vmatpush.msra.mxu0 %v903
        %2156 = vmatpush.msra.mxu0 %v900
        %2157 = vmatpush.msra.mxu0 %v897
        %2158 = vmatpush.msra.mxu0 %v894
        %2159 = vmatpush.msra.mxu0 %v891
        %2160 = vmatpush.msra.mxu0 %v888
        %2161 = vmatpush.msra.mxu0 %v885
        %2162 = vmatpush.msra.mxu0 %v882
        %2163 = vmatpush.msra.mxu0 %v879
        %2164 = vmatpush.msra.mxu0 %v876
        %2165 = vmatmul.f32.gmra.mxu0 %v1145
        %v2166 = vpop.f32.mrf.mxu0
        %v2167 = vadd.f32 %v2147, %v2166
        %2168 = vdwg.mxu0
        %2169 = vmatpush.msra.mxu0 %v969
        %2170 = vmatpush.msra.mxu0 %v966
        %2171 = vmatpush.msra.mxu0 %v963
        %2172 = vmatpush.msra.mxu0 %v960
        %2173 = vmatpush.msra.mxu0 %v957
        %2174 = vmatpush.msra.mxu0 %v954
        %2175 = vmatpush.msra.mxu0 %v951
        %2176 = vmatpush.msra.mxu0 %v948
        %2177 = vmatpush.msra.mxu0 %v945
        %2178 = vmatpush.msra.mxu0 %v942
        %2179 = vmatpush.msra.mxu0 %v939
        %2180 = vmatpush.msra.mxu0 %v936
        %2181 = vmatpush.msra.mxu0 %v933
        %2182 = vmatpush.msra.mxu0 %v930
        %2183 = vmatpush.msra.mxu0 %v927
        %2184 = vmatpush.msra.mxu0 %v924
        %2185 = vmatmul.f32.gmra.mxu0 %v1146
        %v2186 = vpop.f32.mrf.mxu0
        %v2187 = vadd.f32 %v2167, %v2186
        %2188 = vdwg.mxu0
        %2189 = vmatpush.msra.mxu0 %v1017
        %2190 = vmatpush.msra.mxu0 %v1014
        %2191 = vmatpush.msra.mxu0 %v1011
        %2192 = vmatpush.msra.mxu0 %v1008
        %2193 = vmatpush.msra.mxu0 %v1005
        %2194 = vmatpush.msra.mxu0 %v1002
        %2195 = vmatpush.msra.mxu0 %v999
        %2196 = vmatpush.msra.mxu0 %v996
        %2197 = vmatpush.msra.mxu0 %v993
        %2198 = vmatpush.msra.mxu0 %v990
        %2199 = vmatpush.msra.mxu0 %v987
        %2200 = vmatpush.msra.mxu0 %v984
        %2201 = vmatpush.msra.mxu0 %v981
        %2202 = vmatpush.msra.mxu0 %v978
        %2203 = vmatpush.msra.mxu0 %v975
        %2204 = vmatpush.msra.mxu0 %v972
        %2205 = vmatmul.f32.gmra.mxu0 %v1147
        %v2206 = vpop.f32.mrf.mxu0
        %v2207 = vadd.f32 %v2187, %v2206
        %2208 = vdwg.mxu0
        %2209 = vmatpush.msra.mxu0 %v1065
        %2210 = vmatpush.msra.mxu0 %v1062
        %2211 = vmatpush.msra.mxu0 %v1059
        %2212 = vmatpush.msra.mxu0 %v1056
        %2213 = vmatpush.msra.mxu0 %v1053
        %2214 = vmatpush.msra.mxu0 %v1050
        %2215 = vmatpush.msra.mxu0 %v1047
        %2216 = vmatpush.msra.mxu0 %v1044
        %2217 = vmatpush.msra.mxu0 %v1041
        %2218 = vmatpush.msra.mxu0 %v1038
        %2219 = vmatpush.msra.mxu0 %v1035
        %2220 = vmatpush.msra.mxu0 %v1032
        %2221 = vmatpush.msra.mxu0 %v1029
        %2222 = vmatpush.msra.mxu0 %v1026
        %2223 = vmatpush.msra.mxu0 %v1023
        %2224 = vmatpush.msra.mxu0 %v1020
        %2225 = vmatmul.f32.gmra.mxu0 %v1149
        %v2226 = vpop.f32.mrf.mxu0
        %v2227 = vadd.f32 %v2207, %v2226
        %2228 = vdwg.mxu0
        %2229 = vmatpush.msra.mxu0 %v1113
        %2230 = vmatpush.msra.mxu0 %v1110
        %2231 = vmatpush.msra.mxu0 %v1107
        %2232 = vmatpush.msra.mxu0 %v1104
        %2233 = vmatpush.msra.mxu0 %v1101
        %2234 = vmatpush.msra.mxu0 %v1098
        %2235 = vmatpush.msra.mxu0 %v1095
        %2236 = vmatpush.msra.mxu0 %v1092
        %2237 = vmatpush.msra.mxu0 %v1089
        %2238 = vmatpush.msra.mxu0 %v1086
        %2239 = vmatpush.msra.mxu0 %v1083
        %2240 = vmatpush.msra.mxu0 %v1080
        %2241 = vmatpush.msra.mxu0 %v1077
        %2242 = vmatpush.msra.mxu0 %v1074
        %2243 = vmatpush.msra.mxu0 %v1071
        %2244 = vmatpush.msra.mxu0 %v1068
        %2245 = vmatmul.f32.gmra.mxu0 %v1150
        %v2246 = vpop.f32.mrf.mxu0
        %v2247 = vadd.f32 %v2227, %v2246
        %2248 = vdwg.mxu0
        %v2252 = vrot.slane %v1887, 6
        %v2253 = vrot.slane %v2247, 4
        %vm2254 = vcmask 1041408
        %v2255 = vsel %vm2254, %v1527, %v2252
        %vm2256 = vcmask 1043456
        %v2257 = vsel %vm2256, %v2255, %v2253
        %2259 = vst [vmem:[%s241] sm:$0x3f] %v2257
        %s2260 = sand.u32 %s102, 1
        %s2261 = scalar_lea.sflag [#allocation4], %s2260
        %s2262 = sand.u32 %s102, 1
        %s2263 = smul.addr %s2262, 6
        %s2264 = scalar_lea.vmem [#allocation8], %s2263
        // Predicated region
        $region45: #{tpu_custom_call.1} parent=31 // pred_check
          %p2265 = pneg %p112
        $region46: #{tpu_custom_call.1} parent=31 // pred_check_branch
          %2267 = sbr.rel (%p2265) target = $region48
        $region47: #{tpu_custom_call.1} parent=31 // pred_region
          %s2268 = smul.u32 3, %s21
          %2270 = vsyncadd %s2261, 0
          %s2271 = smul.addr %s2268, 2
          %s2272 = scalar_lea.hbm %s3, %s2271
          %s2274 = sshll.u32 %s2264, 4
          %s2275 = int_to_ptr.vmem [resolvable:$true] %s2274
          %s2276 = sshll.u32 %s2272, 4
          %s2277 = int_to_ptr.hbm [resolvable:$true] %s2276
          %2279 = dma.vmem_to_hbm [thread:$0]  %s2275, 96, %s2277, %s2261
        $region48: #{tpu_custom_call.1} parent=31 // pred_fallthru
          _
      $region32: #{tpu_custom_call.1} parent=5 // pred_fallthru
        _
      %p2280 = scmp.le.s32.totalorder 2, %s16
      // Predicated region
      $region49: #{tpu_custom_call.1} parent=5 // pred_check
        %p2281 = pneg %p2280
      $region50: #{tpu_custom_call.1} parent=5 // pred_check_branch
        %2283 = sbr.rel (%p2281) target = $region52
      $region51: #{tpu_custom_call.1} parent=5 // pred_region
        %s2284 = ssub.s32 %s16, 2
        // Predicated region
        $region53: #{tpu_custom_call.1} parent=51 // pred_check
          %p2285 = pneg %p118
        $region54: #{tpu_custom_call.1} parent=51 // pred_check_branch
          %2287 = sbr.rel (%p2285) target = $region56
        $region55: #{tpu_custom_call.1} parent=51 // pred_region
          %s2288 = sand.u32 %s103, 1
          %s2289 = scalar_lea.sflag [#allocation4], %s2288
          %s2290 = sand.u32 %s103, 1
          %s2291 = smul.addr %s2290, 6
          %s2292 = scalar_lea.vmem [#allocation8], %s2291
          %2294 = dma.done %s2289, 96
        $region56: #{tpu_custom_call.1} parent=51 // pred_fallthru
          _
      $region52: #{tpu_custom_call.1} parent=5 // pred_fallthru
        _
    $region6: #{tpu_custom_call.1} parent=1 // loop_footer
      %s20 = sadd.s32 1, %s16
    $region7: #{tpu_custom_call.1} parent=1 // loop_footer_branch
      %15 = sbr.rel target = $region3
    $region8: #{tpu_custom_call.1} parent=1 // loop_exit
      _
    %2295 = vsyncpa [#allocation3], 1
    %s2296 = scalar_lea.sflag [#allocation3], 1
    %2297 = vsyncpa %s2296, 1
    %2298 = vsyncpa [#allocation6], 1
    %s2299 = scalar_lea.sflag [#allocation6], 1
    %2300 = vsyncpa %s2299, 1
    %2301 = vsyncpa [#allocation4], 1
    %s2302 = scalar_lea.sflag [#allocation4], 1
    %2303 = vsyncpa %s2302, 1

</llo_original>
